<compile_context>
chip_gen: v5e
topology: v5e:2x2
jax: 0.10.0
libtpu: 0.0.40
codegen_flags: <defaults>
</compile_context>

<pallas_src>
import jax
import jax.numpy as jnp
from jax.experimental import pallas as pl
from jax.experimental.pallas import tpu as pltpu


def _upsample_conv_kernel(a_ref, h0_ref, h1_ref, w_ref, b_ref, o_ref, rows_ref):
    # a_ref   : [1, TH, W+2, C]   padded input rows t*TH .. t*TH+TH-1
    # h0_ref  : [1, 1,  W+2, C]   halo row t*TH+TH
    # h1_ref  : [1, 1,  W+2, C]   halo row t*TH+TH+1
    # w_ref   : [16, C, C]        collapsed phase/tap weights (Cin, Cout)
    # b_ref   : [1, C]            bias
    # o_ref   : [1, TH, 2, W, 2C] output row-pairs; px phases packed on lanes
    # rows_ref: VMEM scratch [TH+2, W+2, C] (tile + 2-row halo, contiguous)
    TH = a_ref.shape[1]
    Wp = a_ref.shape[2]
    W = Wp - 2
    C = b_ref.shape[1]

    # Assemble the contiguous (TH+2)-row working window in VMEM.
    rows_ref[0:TH] = a_ref[0]
    rows_ref[TH:TH + 1] = h0_ref[0]
    rows_ref[TH + 1:TH + 2] = h1_ref[0]

    bias = b_ref[...].astype(jnp.float32)                   # [1, C]

    for py in range(2):                                      # output row phase
        phase_out = []
        for px in range(2):                                  # output col phase
            acc = None
            for a in range(2):                               # collapsed row tap
                for bb in range(2):                          # collapsed col tap
                    tap = ((py * 2 + px) * 2 + a) * 2 + bb
                    lhs = rows_ref[py + a: py + a + TH,
                                   px + bb: px + bb + W, :]  # [TH, W, C]
                    # Layout-free collapse (W % 8 == 0 or TH == 1 guaranteed
                    # by the wrapper) -> one big MXU matmul per tap.
                    lhs = lhs.reshape(TH * W, C)
                    part = jnp.dot(lhs, w_ref[tap],
                                   preferred_element_type=jnp.float32)
                    acc = part if acc is None else acc + part
            phase_out.append((acc + bias).reshape(TH, W, C))
        # pack the two px phases along lanes -> [TH, W, 2C]; py picks the slot
        o_ref[0, :, py, :, :] = jnp.concatenate(
            phase_out, axis=-1).astype(o_ref.dtype)


def prepare_upsample_conv_params(conv_weight, conv_bias):
    """One-time (parameter-load-time) repack of the torch Conv2d parameters.

    conv_weight: [C_out, C_in, 3, 3] (torch layout), conv_bias: [C_out].
    Returns (w_taps [16, C_in, C_out], bias [1, C_out])."""
    c_out, c_in = conv_weight.shape[0], conv_weight.shape[1]
    assert conv_weight.shape == (c_out, c_in, 3, 3) and c_out == c_in
    # S[p, a, k] = 1 iff original tap k collapses into 2-tap position a of phase p.
    S = jnp.array([[[1.0, 0.0, 0.0], [0.0, 1.0, 1.0]],
                   [[1.0, 1.0, 0.0], [0.0, 0.0, 1.0]]], dtype=conv_weight.dtype)
    w_taps = jnp.einsum('pak,qbl,oikl->pqabio', S, S, conv_weight)
    return w_taps.reshape(16, c_in, c_out), conv_bias.reshape(1, c_out)


def upsample_forward(x_nchw, w_taps, bias_row):
    """UpSample.forward. x_nchw: [B, C, H, W]; params from
    prepare_upsample_conv_params. Returns [B, C, 2H, 2W]."""
    B, C, H, W = x_nchw.shape
    assert w_taps.shape == (16, C, C) and bias_row.shape == (1, C)

    # Layout glue on activations only: NCHW -> NHWC + 1-pixel spatial zero pad.
    x = jnp.transpose(x_nchw, (0, 2, 3, 1))
    xp = jnp.pad(x, ((0, 0), (1, 1), (1, 1), (0, 0)))
    Wp = W + 2

    # Row-tile size: biggest of {8,4,2} dividing H; TH>1 additionally requires
    # W % 8 == 0 so the in-kernel (TH,W,C)->(TH*W,C) reshape is a layout no-op.
    TH = 1
    if W % 8 == 0:
        for cand in (8, 4, 2):
            if H % cand == 0:
                TH = cand
                break

    itemsize = x.dtype.itemsize
    flops = 2 * B * H * W * 16 * C * C
    bytes_accessed = int((1 + 2 / TH) * xp.size * itemsize
                         + w_taps.size * w_taps.dtype.itemsize
                         + bias_row.size * bias_row.dtype.itemsize
                         + B * (2 * H) * (2 * W) * C * itemsize)

    out = pl.pallas_call(
        _upsample_conv_kernel,
        grid=(B, H // TH),
        in_specs=[
            # main TH-row tile
            pl.BlockSpec((1, TH, Wp, C), lambda b, t: (b, t, 0, 0)),
            # two halo rows (block size 1 -> block index == element row)
            pl.BlockSpec((1, 1, Wp, C), lambda b, t: (b, (t + 1) * TH, 0, 0)),
            pl.BlockSpec((1, 1, Wp, C), lambda b, t: (b, (t + 1) * TH + 1, 0, 0)),
            # weights / bias: constant index map -> DMA'd once
            pl.BlockSpec((16, C, C), lambda b, t: (0, 0, 0)),
            pl.BlockSpec((1, C), lambda b, t: (0, 0)),
        ],
        out_specs=pl.BlockSpec((1, TH, 2, W, 2 * C),
                               lambda b, t: (b, t, 0, 0, 0)),
        out_shape=jax.ShapeDtypeStruct((B, H, 2, W, 2 * C), x.dtype),
        scratch_shapes=[pltpu.VMEM((TH + 2, Wp, C), x.dtype)],
        compiler_params=pltpu.CompilerParams(
            dimension_semantics=("parallel", "parallel")),
        cost_estimate=pl.CostEstimate(flops=flops, transcendentals=0,
                                      bytes_accessed=bytes_accessed),
    )(xp, xp, xp, w_taps, bias_row)

    # [B, H, 2, W, 2C] is bit-identical (row-major) to NHWC [B, 2H, 2W, C]:
    # the reshape below is free; only the final NCHW transpose moves data.
    out = out.reshape(B, 2 * H, 2 * W, C)
    return jnp.transpose(out, (0, 3, 1, 2))


def _reference(x, w, b):
    """Pure-JAX reference: nearest 2x upsample + 3x3 conv (padding=1), NCHW."""
    up = jnp.repeat(jnp.repeat(x, 2, axis=2), 2, axis=3)
    out = jax.lax.conv_general_dilated(
        up, w, window_strides=(1, 1), padding=((1, 1), (1, 1)),
        dimension_numbers=("NCHW", "OIHW", "NCHW"))
    return out + b[None, :, None, None]


if __name__ == "__main__":
    B, C, H, W = 2, 4, 16, 16

    key = jax.random.PRNGKey(0)
    kx, kw, kb = jax.random.split(key, 3)

    x = jax.random.normal(kx, (B, C, H, W), dtype=jnp.float32)
    fan_in = C * 3 * 3
    w = jax.random.uniform(kw, (C, C, 3, 3), jnp.float32,
                           -1.0, 1.0) / jnp.sqrt(fan_in)
    b = jax.random.uniform(kb, (C,), jnp.float32,
                           -1.0, 1.0) / jnp.sqrt(fan_in)

    # One-time weight repack (load time), then the per-call forward.
    w_taps, bias_row = prepare_upsample_conv_params(w, b)
    out = upsample_forward(x, w_taps, bias_row)
    out = jax.block_until_ready(out)

    ref = _reference(x, w, b)
    assert out.shape == (B, C, 2 * H, 2 * W), out.shape
    assert jnp.allclose(out, ref, atol=1e-4, rtol=1e-4), \
        float(jnp.max(jnp.abs(out - ref)))
    print("KERNEL_OK")
</pallas_src>

<mosaic_0001>
module attributes {stable_mosaic.version = 11 : i64} {
  func.func @_upsample_conv_kernel(%arg0: i32, %arg1: i32, %arg2: memref<1x8x18x4xf32, #tpu.memory_space<vmem>>, %arg3: memref<1x1x18x4xf32, #tpu.memory_space<vmem>>, %arg4: memref<1x1x18x4xf32, #tpu.memory_space<vmem>>, %arg5: memref<16x4x4xf32, #tpu.memory_space<vmem>>, %arg6: memref<1x4xf32, #tpu.memory_space<vmem>>, %arg7: memref<1x8x2x16x8xf32, #tpu.memory_space<vmem>>, %arg8: memref<10x18x4xf32, #tpu.memory_space<vmem>>) attributes {dimension_semantics = [#tpu.dimension_semantics<parallel>, #tpu.dimension_semantics<parallel>], iteration_bounds = array<i64: 2, 2>, scalar_prefetch = 0 : i64, scratch_operands = 1 : i64, tpu.core_type = #tpu.core_type<tc>, window_params = [{transform_indices = @transform_0, window_bounds = array<i64: 1, 8, 18, 4>}, {transform_indices = @transform_1, window_bounds = array<i64: 1, 1, 18, 4>}, {transform_indices = @transform_2, window_bounds = array<i64: 1, 1, 18, 4>}, {pipeline_mode = #tpu.pipeline_mode<synchronous>, transform_indices = @transform_3, window_bounds = array<i64: 16, 4, 4>}, {pipeline_mode = #tpu.pipeline_mode<synchronous>, transform_indices = @transform_4, window_bounds = array<i64: 1, 4>}, {transform_indices = @transform_5, window_bounds = array<i64: 1, 8, 2, 16, 8>}]} {
    %c0 = arith.constant 0 : index
    %c0_0 = arith.constant 0 : index
    %c0_1 = arith.constant 0 : index
    %c0_2 = arith.constant 0 : index
    %0 = vector.load %arg2[%c0, %c0_0, %c0_1, %c0_2] : memref<1x8x18x4xf32, #tpu.memory_space<vmem>>, vector<1x8x18x4xf32>
    %1 = vector.shape_cast %0 : vector<1x8x18x4xf32> to vector<8x18x4xf32>
    %c0_3 = arith.constant 0 : index
    %c0_4 = arith.constant 0 : index
    %c0_5 = arith.constant 0 : index
    %2 = vector.load %arg8[%c0_3, %c0_4, %c0_5] : memref<10x18x4xf32, #tpu.memory_space<vmem>>, vector<8x18x4xf32>
    tpu.vector_store %arg8[%c0_3, %c0_4, %c0_5], %1 {strides = array<i32>} : memref<10x18x4xf32, #tpu.memory_space<vmem>>, vector<8x18x4xf32>,
    %c0_6 = arith.constant 0 : index
    %c0_7 = arith.constant 0 : index
    %c0_8 = arith.constant 0 : index
    %c0_9 = arith.constant 0 : index
    %3 = vector.load %arg3[%c0_6, %c0_7, %c0_8, %c0_9] : memref<1x1x18x4xf32, #tpu.memory_space<vmem>>, vector<1x1x18x4xf32>
    %4 = vector.shape_cast %3 : vector<1x1x18x4xf32> to vector<1x18x4xf32>
    %c8 = arith.constant 8 : index
    %c0_10 = arith.constant 0 : index
    %c0_11 = arith.constant 0 : index
    %5 = vector.load %arg8[%c8, %c0_10, %c0_11] : memref<10x18x4xf32, #tpu.memory_space<vmem>>, vector<1x18x4xf32>
    tpu.vector_store %arg8[%c8, %c0_10, %c0_11], %4 {strides = array<i32>} : memref<10x18x4xf32, #tpu.memory_space<vmem>>, vector<1x18x4xf32>,
    %c0_12 = arith.constant 0 : index
    %c0_13 = arith.constant 0 : index
    %c0_14 = arith.constant 0 : index
    %c0_15 = arith.constant 0 : index
    %6 = vector.load %arg4[%c0_12, %c0_13, %c0_14, %c0_15] : memref<1x1x18x4xf32, #tpu.memory_space<vmem>>, vector<1x1x18x4xf32>
    %7 = vector.shape_cast %6 : vector<1x1x18x4xf32> to vector<1x18x4xf32>
    %c9 = arith.constant 9 : index
    %c0_16 = arith.constant 0 : index
    %c0_17 = arith.constant 0 : index
    %8 = vector.load %arg8[%c9, %c0_16, %c0_17] : memref<10x18x4xf32, #tpu.memory_space<vmem>>, vector<1x18x4xf32>
    tpu.vector_store %arg8[%c9, %c0_16, %c0_17], %7 {strides = array<i32>} : memref<10x18x4xf32, #tpu.memory_space<vmem>>, vector<1x18x4xf32>,
    %c0_18 = arith.constant 0 : index
    %c0_19 = arith.constant 0 : index
    %9 = vector.load %arg6[%c0_18, %c0_19] : memref<1x4xf32, #tpu.memory_space<vmem>>, vector<1x4xf32>
    %c0_20 = arith.constant 0 : index
    %c0_21 = arith.constant 0 : index
    %c0_22 = arith.constant 0 : index
    %10 = vector.load %arg8[%c0_20, %c0_21, %c0_22] : memref<10x18x4xf32, #tpu.memory_space<vmem>>, vector<8x16x4xf32>
    %11 = vector.shape_cast %10 : vector<8x16x4xf32> to vector<128x4xf32>
    %c0_23 = arith.constant 0 : index
    %c0_24 = arith.constant 0 : index
    %c0_25 = arith.constant 0 : index
    %12 = vector.load %arg5[%c0_23, %c0_24, %c0_25] : memref<16x4x4xf32, #tpu.memory_space<vmem>>, vector<1x4x4xf32>
    %13 = vector.shape_cast %12 : vector<1x4x4xf32> to vector<4x4xf32>
    %cst = arith.constant dense<0.000000e+00> : vector<128x4xf32>
    %14 = tpu.matmul %11, %13, %cst {dimension_numbers = #tpu.dot_dimension_numbers<[1], [0], [0], [1], [0, 0, 1, 1], [], []>} : vector<128x4xf32>, vector<4x4xf32>, vector<128x4xf32> -> vector<128x4xf32>
    %c0_26 = arith.constant 0 : index
    %c1 = arith.constant 1 : index
    %c0_27 = arith.constant 0 : index
    %15 = vector.load %arg8[%c0_26, %c1, %c0_27] : memref<10x18x4xf32, #tpu.memory_space<vmem>>, vector<8x16x4xf32>
    %16 = vector.shape_cast %15 : vector<8x16x4xf32> to vector<128x4xf32>
    %c1_28 = arith.constant 1 : index
    %c0_29 = arith.constant 0 : index
    %c0_30 = arith.constant 0 : index
    %17 = vector.load %arg5[%c1_28, %c0_29, %c0_30] : memref<16x4x4xf32, #tpu.memory_space<vmem>>, vector<1x4x4xf32>
    %18 = vector.shape_cast %17 : vector<1x4x4xf32> to vector<4x4xf32>
    %cst_31 = arith.constant dense<0.000000e+00> : vector<128x4xf32>
    %19 = tpu.matmul %16, %18, %cst_31 {dimension_numbers = #tpu.dot_dimension_numbers<[1], [0], [0], [1], [0, 0, 1, 1], [], []>} : vector<128x4xf32>, vector<4x4xf32>, vector<128x4xf32> -> vector<128x4xf32>
    %20 = arith.addf %14, %19 : vector<128x4xf32>
    %c1_32 = arith.constant 1 : index
    %c0_33 = arith.constant 0 : index
    %c0_34 = arith.constant 0 : index
    %21 = vector.load %arg8[%c1_32, %c0_33, %c0_34] : memref<10x18x4xf32, #tpu.memory_space<vmem>>, vector<8x16x4xf32>
    %22 = vector.shape_cast %21 : vector<8x16x4xf32> to vector<128x4xf32>
    %c2 = arith.constant 2 : index
    %c0_35 = arith.constant 0 : index
    %c0_36 = arith.constant 0 : index
    %23 = vector.load %arg5[%c2, %c0_35, %c0_36] : memref<16x4x4xf32, #tpu.memory_space<vmem>>, vector<1x4x4xf32>
    %24 = vector.shape_cast %23 : vector<1x4x4xf32> to vector<4x4xf32>
    %cst_37 = arith.constant dense<0.000000e+00> : vector<128x4xf32>
    %25 = tpu.matmul %22, %24, %cst_37 {dimension_numbers = #tpu.dot_dimension_numbers<[1], [0], [0], [1], [0, 0, 1, 1], [], []>} : vector<128x4xf32>, vector<4x4xf32>, vector<128x4xf32> -> vector<128x4xf32>
    %26 = arith.addf %20, %25 : vector<128x4xf32>
    %c1_38 = arith.constant 1 : index
    %c1_39 = arith.constant 1 : index
    %c0_40 = arith.constant 0 : index
    %27 = vector.load %arg8[%c1_38, %c1_39, %c0_40] : memref<10x18x4xf32, #tpu.memory_space<vmem>>, vector<8x16x4xf32>
    %28 = vector.shape_cast %27 : vector<8x16x4xf32> to vector<128x4xf32>
    %c3 = arith.constant 3 : index
    %c0_41 = arith.constant 0 : index
    %c0_42 = arith.constant 0 : index
    %29 = vector.load %arg5[%c3, %c0_41, %c0_42] : memref<16x4x4xf32, #tpu.memory_space<vmem>>, vector<1x4x4xf32>
    %30 = vector.shape_cast %29 : vector<1x4x4xf32> to vector<4x4xf32>
    %cst_43 = arith.constant dense<0.000000e+00> : vector<128x4xf32>
    %31 = tpu.matmul %28, %30, %cst_43 {dimension_numbers = #tpu.dot_dimension_numbers<[1], [0], [0], [1], [0, 0, 1, 1], [], []>} : vector<128x4xf32>, vector<4x4xf32>, vector<128x4xf32> -> vector<128x4xf32>
    %32 = arith.addf %26, %31 : vector<128x4xf32>
    %33 = vector.broadcast %9 : vector<1x4xf32> to vector<128x4xf32>
    %34 = arith.addf %32, %33 : vector<128x4xf32>
    %35 = vector.shape_cast %34 : vector<128x4xf32> to vector<8x16x4xf32>
    %c0_44 = arith.constant 0 : index
    %c1_45 = arith.constant 1 : index
    %c0_46 = arith.constant 0 : index
    %36 = vector.load %arg8[%c0_44, %c1_45, %c0_46] : memref<10x18x4xf32, #tpu.memory_space<vmem>>, vector<8x16x4xf32>
    %37 = vector.shape_cast %36 : vector<8x16x4xf32> to vector<128x4xf32>
    %c4 = arith.constant 4 : index
    %c0_47 = arith.constant 0 : index
    %c0_48 = arith.constant 0 : index
    %38 = vector.load %arg5[%c4, %c0_47, %c0_48] : memref<16x4x4xf32, #tpu.memory_space<vmem>>, vector<1x4x4xf32>
    %39 = vector.shape_cast %38 : vector<1x4x4xf32> to vector<4x4xf32>
    %cst_49 = arith.constant dense<0.000000e+00> : vector<128x4xf32>
    %40 = tpu.matmul %37, %39, %cst_49 {dimension_numbers = #tpu.dot_dimension_numbers<[1], [0], [0], [1], [0, 0, 1, 1], [], []>} : vector<128x4xf32>, vector<4x4xf32>, vector<128x4xf32> -> vector<128x4xf32>
    %c0_50 = arith.constant 0 : index
    %c2_51 = arith.constant 2 : index
    %c0_52 = arith.constant 0 : index
    %41 = vector.load %arg8[%c0_50, %c2_51, %c0_52] : memref<10x18x4xf32, #tpu.memory_space<vmem>>, vector<8x16x4xf32>
    %42 = vector.shape_cast %41 : vector<8x16x4xf32> to vector<128x4xf32>
    %c5 = arith.constant 5 : index
    %c0_53 = arith.constant 0 : index
    %c0_54 = arith.constant 0 : index
    %43 = vector.load %arg5[%c5, %c0_53, %c0_54] : memref<16x4x4xf32, #tpu.memory_space<vmem>>, vector<1x4x4xf32>
    %44 = vector.shape_cast %43 : vector<1x4x4xf32> to vector<4x4xf32>
    %cst_55 = arith.constant dense<0.000000e+00> : vector<128x4xf32>
    %45 = tpu.matmul %42, %44, %cst_55 {dimension_numbers = #tpu.dot_dimension_numbers<[1], [0], [0], [1], [0, 0, 1, 1], [], []>} : vector<128x4xf32>, vector<4x4xf32>, vector<128x4xf32> -> vector<128x4xf32>
    %46 = arith.addf %40, %45 : vector<128x4xf32>
    %c1_56 = arith.constant 1 : index
    %c1_57 = arith.constant 1 : index
    %c0_58 = arith.constant 0 : index
    %47 = vector.load %arg8[%c1_56, %c1_57, %c0_58] : memref<10x18x4xf32, #tpu.memory_space<vmem>>, vector<8x16x4xf32>
    %48 = vector.shape_cast %47 : vector<8x16x4xf32> to vector<128x4xf32>
    %c6 = arith.constant 6 : index
    %c0_59 = arith.constant 0 : index
    %c0_60 = arith.constant 0 : index
    %49 = vector.load %arg5[%c6, %c0_59, %c0_60] : memref<16x4x4xf32, #tpu.memory_space<vmem>>, vector<1x4x4xf32>
    %50 = vector.shape_cast %49 : vector<1x4x4xf32> to vector<4x4xf32>
    %cst_61 = arith.constant dense<0.000000e+00> : vector<128x4xf32>
    %51 = tpu.matmul %48, %50, %cst_61 {dimension_numbers = #tpu.dot_dimension_numbers<[1], [0], [0], [1], [0, 0, 1, 1], [], []>} : vector<128x4xf32>, vector<4x4xf32>, vector<128x4xf32> -> vector<128x4xf32>
    %52 = arith.addf %46, %51 : vector<128x4xf32>
    %c1_62 = arith.constant 1 : index
    %c2_63 = arith.constant 2 : index
    %c0_64 = arith.constant 0 : index
    %53 = vector.load %arg8[%c1_62, %c2_63, %c0_64] : memref<10x18x4xf32, #tpu.memory_space<vmem>>, vector<8x16x4xf32>
    %54 = vector.shape_cast %53 : vector<8x16x4xf32> to vector<128x4xf32>
    %c7 = arith.constant 7 : index
    %c0_65 = arith.constant 0 : index
    %c0_66 = arith.constant 0 : index
    %55 = vector.load %arg5[%c7, %c0_65, %c0_66] : memref<16x4x4xf32, #tpu.memory_space<vmem>>, vector<1x4x4xf32>
    %56 = vector.shape_cast %55 : vector<1x4x4xf32> to vector<4x4xf32>
    %cst_67 = arith.constant dense<0.000000e+00> : vector<128x4xf32>
    %57 = tpu.matmul %54, %56, %cst_67 {dimension_numbers = #tpu.dot_dimension_numbers<[1], [0], [0], [1], [0, 0, 1, 1], [], []>} : vector<128x4xf32>, vector<4x4xf32>, vector<128x4xf32> -> vector<128x4xf32>
    %58 = arith.addf %52, %57 : vector<128x4xf32>
    %59 = vector.broadcast %9 : vector<1x4xf32> to vector<128x4xf32>
    %60 = arith.addf %58, %59 : vector<128x4xf32>
    %61 = vector.shape_cast %60 : vector<128x4xf32> to vector<8x16x4xf32>
    %62 = tpu.concatenate %35, %61 in 2 : vector<8x16x4xf32>, vector<8x16x4xf32> -> vector<8x16x8xf32>
    %c0_68 = arith.constant 0 : index
    %c0_69 = arith.constant 0 : index
    %c0_70 = arith.constant 0 : index
    %c0_71 = arith.constant 0 : index
    %c0_72 = arith.constant 0 : index
    %63 = vector.load %arg7[%c0_68, %c0_69, %c0_70, %c0_71, %c0_72] : memref<1x8x2x16x8xf32, #tpu.memory_space<vmem>>, vector<1x8x1x16x8xf32>
    %64 = vector.shape_cast %63 : vector<1x8x1x16x8xf32> to vector<8x16x8xf32>
    %65 = vector.shape_cast %62 : vector<8x16x8xf32> to vector<1x8x1x16x8xf32>
    tpu.vector_store %arg7[%c0_68, %c0_69, %c0_70, %c0_71, %c0_72], %65 {strides = array<i32>} : memref<1x8x2x16x8xf32, #tpu.memory_space<vmem>>, vector<1x8x1x16x8xf32>,
    %c1_73 = arith.constant 1 : index
    %c0_74 = arith.constant 0 : index
    %c0_75 = arith.constant 0 : index
    %66 = vector.load %arg8[%c1_73, %c0_74, %c0_75] : memref<10x18x4xf32, #tpu.memory_space<vmem>>, vector<8x16x4xf32>
    %67 = vector.shape_cast %66 : vector<8x16x4xf32> to vector<128x4xf32>
    %c8_76 = arith.constant 8 : index
    %c0_77 = arith.constant 0 : index
    %c0_78 = arith.constant 0 : index
    %68 = vector.load %arg5[%c8_76, %c0_77, %c0_78] : memref<16x4x4xf32, #tpu.memory_space<vmem>>, vector<1x4x4xf32>
    %69 = vector.shape_cast %68 : vector<1x4x4xf32> to vector<4x4xf32>
    %cst_79 = arith.constant dense<0.000000e+00> : vector<128x4xf32>
    %70 = tpu.matmul %67, %69, %cst_79 {dimension_numbers = #tpu.dot_dimension_numbers<[1], [0], [0], [1], [0, 0, 1, 1], [], []>} : vector<128x4xf32>, vector<4x4xf32>, vector<128x4xf32> -> vector<128x4xf32>
    %c1_80 = arith.constant 1 : index
    %c1_81 = arith.constant 1 : index
    %c0_82 = arith.constant 0 : index
    %71 = vector.load %arg8[%c1_80, %c1_81, %c0_82] : memref<10x18x4xf32, #tpu.memory_space<vmem>>, vector<8x16x4xf32>
    %72 = vector.shape_cast %71 : vector<8x16x4xf32> to vector<128x4xf32>
    %c9_83 = arith.constant 9 : index
    %c0_84 = arith.constant 0 : index
    %c0_85 = arith.constant 0 : index
    %73 = vector.load %arg5[%c9_83, %c0_84, %c0_85] : memref<16x4x4xf32, #tpu.memory_space<vmem>>, vector<1x4x4xf32>
    %74 = vector.shape_cast %73 : vector<1x4x4xf32> to vector<4x4xf32>
    %cst_86 = arith.constant dense<0.000000e+00> : vector<128x4xf32>
    %75 = tpu.matmul %72, %74, %cst_86 {dimension_numbers = #tpu.dot_dimension_numbers<[1], [0], [0], [1], [0, 0, 1, 1], [], []>} : vector<128x4xf32>, vector<4x4xf32>, vector<128x4xf32> -> vector<128x4xf32>
    %76 = arith.addf %70, %75 : vector<128x4xf32>
    %c2_87 = arith.constant 2 : index
    %c0_88 = arith.constant 0 : index
    %c0_89 = arith.constant 0 : index
    %77 = vector.load %arg8[%c2_87, %c0_88, %c0_89] : memref<10x18x4xf32, #tpu.memory_space<vmem>>, vector<8x16x4xf32>
    %78 = vector.shape_cast %77 : vector<8x16x4xf32> to vector<128x4xf32>
    %c10 = arith.constant 10 : index
    %c0_90 = arith.constant 0 : index
    %c0_91 = arith.constant 0 : index
    %79 = vector.load %arg5[%c10, %c0_90, %c0_91] : memref<16x4x4xf32, #tpu.memory_space<vmem>>, vector<1x4x4xf32>
    %80 = vector.shape_cast %79 : vector<1x4x4xf32> to vector<4x4xf32>
    %cst_92 = arith.constant dense<0.000000e+00> : vector<128x4xf32>
    %81 = tpu.matmul %78, %80, %cst_92 {dimension_numbers = #tpu.dot_dimension_numbers<[1], [0], [0], [1], [0, 0, 1, 1], [], []>} : vector<128x4xf32>, vector<4x4xf32>, vector<128x4xf32> -> vector<128x4xf32>
    %82 = arith.addf %76, %81 : vector<128x4xf32>
    %c2_93 = arith.constant 2 : index
    %c1_94 = arith.constant 1 : index
    %c0_95 = arith.constant 0 : index
    %83 = vector.load %arg8[%c2_93, %c1_94, %c0_95] : memref<10x18x4xf32, #tpu.memory_space<vmem>>, vector<8x16x4xf32>
    %84 = vector.shape_cast %83 : vector<8x16x4xf32> to vector<128x4xf32>
    %c11 = arith.constant 11 : index
    %c0_96 = arith.constant 0 : index
    %c0_97 = arith.constant 0 : index
    %85 = vector.load %arg5[%c11, %c0_96, %c0_97] : memref<16x4x4xf32, #tpu.memory_space<vmem>>, vector<1x4x4xf32>
    %86 = vector.shape_cast %85 : vector<1x4x4xf32> to vector<4x4xf32>
    %cst_98 = arith.constant dense<0.000000e+00> : vector<128x4xf32>
    %87 = tpu.matmul %84, %86, %cst_98 {dimension_numbers = #tpu.dot_dimension_numbers<[1], [0], [0], [1], [0, 0, 1, 1], [], []>} : vector<128x4xf32>, vector<4x4xf32>, vector<128x4xf32> -> vector<128x4xf32>
    %88 = arith.addf %82, %87 : vector<128x4xf32>
    %89 = vector.broadcast %9 : vector<1x4xf32> to vector<128x4xf32>
    %90 = arith.addf %88, %89 : vector<128x4xf32>
    %91 = vector.shape_cast %90 : vector<128x4xf32> to vector<8x16x4xf32>
    %c1_99 = arith.constant 1 : index
    %c1_100 = arith.constant 1 : index
    %c0_101 = arith.constant 0 : index
    %92 = vector.load %arg8[%c1_99, %c1_100, %c0_101] : memref<10x18x4xf32, #tpu.memory_space<vmem>>, vector<8x16x4xf32>
    %93 = vector.shape_cast %92 : vector<8x16x4xf32> to vector<128x4xf32>
    %c12 = arith.constant 12 : index
    %c0_102 = arith.constant 0 : index
    %c0_103 = arith.constant 0 : index
    %94 = vector.load %arg5[%c12, %c0_102, %c0_103] : memref<16x4x4xf32, #tpu.memory_space<vmem>>, vector<1x4x4xf32>
    %95 = vector.shape_cast %94 : vector<1x4x4xf32> to vector<4x4xf32>
    %cst_104 = arith.constant dense<0.000000e+00> : vector<128x4xf32>
    %96 = tpu.matmul %93, %95, %cst_104 {dimension_numbers = #tpu.dot_dimension_numbers<[1], [0], [0], [1], [0, 0, 1, 1], [], []>} : vector<128x4xf32>, vector<4x4xf32>, vector<128x4xf32> -> vector<128x4xf32>
    %c1_105 = arith.constant 1 : index
    %c2_106 = arith.constant 2 : index
    %c0_107 = arith.constant 0 : index
    %97 = vector.load %arg8[%c1_105, %c2_106, %c0_107] : memref<10x18x4xf32, #tpu.memory_space<vmem>>, vector<8x16x4xf32>
    %98 = vector.shape_cast %97 : vector<8x16x4xf32> to vector<128x4xf32>
    %c13 = arith.constant 13 : index
    %c0_108 = arith.constant 0 : index
    %c0_109 = arith.constant 0 : index
    %99 = vector.load %arg5[%c13, %c0_108, %c0_109] : memref<16x4x4xf32, #tpu.memory_space<vmem>>, vector<1x4x4xf32>
    %100 = vector.shape_cast %99 : vector<1x4x4xf32> to vector<4x4xf32>
    %cst_110 = arith.constant dense<0.000000e+00> : vector<128x4xf32>
    %101 = tpu.matmul %98, %100, %cst_110 {dimension_numbers = #tpu.dot_dimension_numbers<[1], [0], [0], [1], [0, 0, 1, 1], [], []>} : vector<128x4xf32>, vector<4x4xf32>, vector<128x4xf32> -> vector<128x4xf32>
    %102 = arith.addf %96, %101 : vector<128x4xf32>
    %c2_111 = arith.constant 2 : index
    %c1_112 = arith.constant 1 : index
    %c0_113 = arith.constant 0 : index
    %103 = vector.load %arg8[%c2_111, %c1_112, %c0_113] : memref<10x18x4xf32, #tpu.memory_space<vmem>>, vector<8x16x4xf32>
    %104 = vector.shape_cast %103 : vector<8x16x4xf32> to vector<128x4xf32>
    %c14 = arith.constant 14 : index
    %c0_114 = arith.constant 0 : index
    %c0_115 = arith.constant 0 : index
    %105 = vector.load %arg5[%c14, %c0_114, %c0_115] : memref<16x4x4xf32, #tpu.memory_space<vmem>>, vector<1x4x4xf32>
    %106 = vector.shape_cast %105 : vector<1x4x4xf32> to vector<4x4xf32>
    %cst_116 = arith.constant dense<0.000000e+00> : vector<128x4xf32>
    %107 = tpu.matmul %104, %106, %cst_116 {dimension_numbers = #tpu.dot_dimension_numbers<[1], [0], [0], [1], [0, 0, 1, 1], [], []>} : vector<128x4xf32>, vector<4x4xf32>, vector<128x4xf32> -> vector<128x4xf32>
    %108 = arith.addf %102, %107 : vector<128x4xf32>
    %c2_117 = arith.constant 2 : index
    %c2_118 = arith.constant 2 : index
    %c0_119 = arith.constant 0 : index
    %109 = vector.load %arg8[%c2_117, %c2_118, %c0_119] : memref<10x18x4xf32, #tpu.memory_space<vmem>>, vector<8x16x4xf32>
    %110 = vector.shape_cast %109 : vector<8x16x4xf32> to vector<128x4xf32>
    %c15 = arith.constant 15 : index
    %c0_120 = arith.constant 0 : index
    %c0_121 = arith.constant 0 : index
    %111 = vector.load %arg5[%c15, %c0_120, %c0_121] : memref<16x4x4xf32, #tpu.memory_space<vmem>>, vector<1x4x4xf32>
    %112 = vector.shape_cast %111 : vector<1x4x4xf32> to vector<4x4xf32>
    %cst_122 = arith.constant dense<0.000000e+00> : vector<128x4xf32>
    %113 = tpu.matmul %110, %112, %cst_122 {dimension_numbers = #tpu.dot_dimension_numbers<[1], [0], [0], [1], [0, 0, 1, 1], [], []>} : vector<128x4xf32>, vector<4x4xf32>, vector<128x4xf32> -> vector<128x4xf32>
    %114 = arith.addf %108, %113 : vector<128x4xf32>
    %115 = vector.broadcast %9 : vector<1x4xf32> to vector<128x4xf32>
    %116 = arith.addf %114, %115 : vector<128x4xf32>
    %117 = vector.shape_cast %116 : vector<128x4xf32> to vector<8x16x4xf32>
    %118 = tpu.concatenate %91, %117 in 2 : vector<8x16x4xf32>, vector<8x16x4xf32> -> vector<8x16x8xf32>
    %c0_123 = arith.constant 0 : index
    %c0_124 = arith.constant 0 : index
    %c1_125 = arith.constant 1 : index
    %c0_126 = arith.constant 0 : index
    %c0_127 = arith.constant 0 : index
    %119 = vector.load %arg7[%c0_123, %c0_124, %c1_125, %c0_126, %c0_127] : memref<1x8x2x16x8xf32, #tpu.memory_space<vmem>>, vector<1x8x1x16x8xf32>
    %120 = vector.shape_cast %119 : vector<1x8x1x16x8xf32> to vector<8x16x8xf32>
    %121 = vector.shape_cast %118 : vector<8x16x8xf32> to vector<1x8x1x16x8xf32>
    tpu.vector_store %arg7[%c0_123, %c0_124, %c1_125, %c0_126, %c0_127], %121 {strides = array<i32>} : memref<1x8x2x16x8xf32, #tpu.memory_space<vmem>>, vector<1x8x1x16x8xf32>,
    return
  }
  func.func @transform_0(%arg0: i32, %arg1: i32) -> (i32, i32, i32, i32) {
    %c0_i32 = arith.constant 0 : i32
    %c0_i32_0 = arith.constant 0 : i32
    %c0_i32_1 = arith.constant 0 : i32
    return %arg0, %arg1, %c0_i32, %c0_i32_0 : i32, i32, i32, i32
  }
  func.func @transform_1(%arg0: i32, %arg1: i32) -> (i32, i32, i32, i32) {
    %c1_i32 = arith.constant 1 : i32
    %0 = arith.addi %arg1, %c1_i32 : i32
    %c8_i32 = arith.constant 8 : i32
    %1 = arith.muli %0, %c8_i32 : i32
    %c0_i32 = arith.constant 0 : i32
    %c0_i32_0 = arith.constant 0 : i32
    %c0_i32_1 = arith.constant 0 : i32
    return %arg0, %1, %c0_i32, %c0_i32_0 : i32, i32, i32, i32
  }
  func.func @transform_2(%arg0: i32, %arg1: i32) -> (i32, i32, i32, i32) {
    %c1_i32 = arith.constant 1 : i32
    %0 = arith.addi %arg1, %c1_i32 : i32
    %c8_i32 = arith.constant 8 : i32
    %1 = arith.muli %0, %c8_i32 : i32
    %c1_i32_0 = arith.constant 1 : i32
    %2 = arith.addi %1, %c1_i32_0 : i32
    %c0_i32 = arith.constant 0 : i32
    %c0_i32_1 = arith.constant 0 : i32
    %c0_i32_2 = arith.constant 0 : i32
    return %arg0, %2, %c0_i32, %c0_i32_1 : i32, i32, i32, i32
  }
  func.func @transform_3(%arg0: i32, %arg1: i32) -> (i32, i32, i32) {
    %c0_i32 = arith.constant 0 : i32
    %c0_i32_0 = arith.constant 0 : i32
    %c0_i32_1 = arith.constant 0 : i32
    %c0_i32_2 = arith.constant 0 : i32
    return %c0_i32, %c0_i32_0, %c0_i32_1 : i32, i32, i32
  }
  func.func @transform_4(%arg0: i32, %arg1: i32) -> (i32, i32) {
    %c0_i32 = arith.constant 0 : i32
    %c0_i32_0 = arith.constant 0 : i32
    %c0_i32_1 = arith.constant 0 : i32
    return %c0_i32, %c0_i32_0 : i32, i32
  }
  func.func @transform_5(%arg0: i32, %arg1: i32) -> (i32, i32, i32, i32, i32) {
    %c0_i32 = arith.constant 0 : i32
    %c0_i32_0 = arith.constant 0 : i32
    %c0_i32_1 = arith.constant 0 : i32
    %c0_i32_2 = arith.constant 0 : i32
    return %arg0, %arg1, %c0_i32, %c0_i32_0, %c0_i32_1 : i32, i32, i32, i32, i32
  }
}

</mosaic_0001>

<llo_original>
// kernel: tpu_custom_call.1
$region0: #{tpu_custom_call.1}
  #allocation0 [shape = 'u32[]', space=smem, size = 0x4, offset = 0x4, fixed_abs, tag = 'smem constant byte address 0x4 - core index']
  #allocation1 [shape = 'u32[72,128]{1,0:T(1,128)}', space=vmem, size = 0x9000, scoped, tag = 'internal scratch']
  #allocation2 [shape = 'f32[10,18,4]{2,1,0:T(8,128)}', space=vmem, size = 0x1e000, scoped, tag = 'scratch operand']
  %s0 = inlined_call_operand.vmem [shape: f32[2,18,18,4], index: 0, kind: input, shape index: {}]
  %s1 = inlined_call_operand.vmem [shape: f32[2,18,18,4], index: 1, kind: input, shape index: {}]
  %s2 = inlined_call_operand.vmem [shape: f32[2,18,18,4], index: 2, kind: input, shape index: {}]
  %s3 = inlined_call_operand.vmem [shape: f32[16,4,4], index: 3, kind: input, shape index: {}]
  %s4 = inlined_call_operand.vmem [shape: f32[1,4], index: 4, kind: input, shape index: {}]
  %s5 = inlined_call_operand.vmem [shape: f32[2,16,2,16,8], index: 5, kind: output, shape index: {}]
  %s6 = sld [smem:[#allocation0]]
  $region53: #{tpu_custom_call.1} parent=0
    _
  %s8 = ssub.s32 1, %s6
  %s9 = scalar_select 0, %s8, %s6
  loop: start=0, step=1, limit=6
  $region2: #{tpu_custom_call.1} parent=0 // loop_pre_header
    _
  $region3: #{tpu_custom_call.1} parent=0 // loop_header
    %s11 = sphi 0, %s15
    %p12 = scmp.ge.s32.totalorder %s11, 6
    %s18 = sphi 0, %s30
    %s19 = sphi 0, %s26
    %s20 = sphi 0, %s18
    %s21 = sphi 0, %s19
    %s22 = sphi 0, %s20
    %s23 = sphi 0, %s21
    %s35 = sphi 0, %s37
    %s38 = sphi 0, %s35
    %s39 = sphi 0, %s38
    %s55 = sphi 0, %s39
    %s67 = sphi 0, %s69
    %s70 = sphi 0, %s67
    %s71 = sphi 0, %s70
    %s87 = sphi 0, %s71
    %s101 = sphi 0, %s103
    %s104 = sphi 0, %s101
    %s105 = sphi 0, %s104
    %s121 = sphi 0, %s105
    %s125 = sphi 0, %s125
    %s127 = sphi 0, %s125
    %s128 = sphi 0, %s127
    %s142 = sphi 0, %s128
    %s146 = sphi 0, %s146
    %s148 = sphi 0, %s146
    %s149 = sphi 0, %s148
    %s163 = sphi 0, %s149
    %s171 = sphi 0, %s173
    %s174 = sphi 0, %s171
    %s175 = sphi 0, %s174
    %s191 = sphi 0, %s175
  $region4: #{tpu_custom_call.1} parent=0 // loop_header_branch
    %14 = sbr.rel (%p12) target = $region8
  $region5: #{tpu_custom_call.1} parent=0 // loop_body
    %s16 = ssub.s32 %s11, 1
    %s17 = ssub.s32 %s11, 2
    %s24 = sadd.s32 1, %s19
    %p25 = scmp.ge.s32.totalorder %s24, 2
    %s26 = scalar_select %p25, 0, %s24
    %s27 = sadd.s32 1, %s18
    %s28 = scalar_select %p25, %s27, %s18
    %p29 = scmp.ge.s32.totalorder %s28, 2
    %s30 = scalar_select %p29, 0, %s28
    %s31 = ssub.s32 %s18, %s30
    %s32 = ssub.s32 %s19, %s26
    %s33 = sor.u32 %s31, %s32
    %p34 = scmp.eq.s32.totalorder %s33, 0
    %s36 = sadd.s32 %s35, 1
    %s37 = scalar_select %p34, %s35, %s36
    %p40 = pneg %p34
    %p41 = scmp.eq.s32.totalorder %s11, 3
    %p42 = por %p40, %p41
    %p43 = scmp.ne.s32.totalorder %s35, %s38
    %p44 = scmp.eq.s32.totalorder %s11, 0
    %p45 = por %p43, %p44
    %p46 = scmp.ne.s32.totalorder %s35, %s38
    %p47 = scmp.eq.s32.totalorder %s16, 3
    %p48 = por %p46, %p47
    %p49 = scmp.ne.s32.totalorder %s38, %s39
    %p50 = scmp.eq.s32.totalorder %s16, 0
    %p51 = por %p49, %p50
    %p52 = scmp.ne.s32.totalorder %s38, %s39
    %p53 = scmp.eq.s32.totalorder %s17, 3
    %p54 = por %p52, %p53
    %p56 = scmp.ne.s32.totalorder %s39, %s55
    %p57 = scmp.eq.s32.totalorder %s17, 0
    %p58 = por %p56, %p57
    %s59 = sadd.s32 %s19, 1
    %s60 = smul.u32 %s59, 8
    %s61 = sadd.s32 %s26, 1
    %s62 = smul.u32 %s61, 8
    %s63 = ssub.s32 %s18, %s30
    %s64 = ssub.s32 %s60, %s62
    %s65 = sor.u32 %s63, %s64
    %p66 = scmp.eq.s32.totalorder %s65, 0
    %s68 = sadd.s32 %s67, 1
    %s69 = scalar_select %p66, %s67, %s68
    %p72 = pneg %p66
    %p73 = scmp.eq.s32.totalorder %s11, 3
    %p74 = por %p72, %p73
    %p75 = scmp.ne.s32.totalorder %s67, %s70
    %p76 = scmp.eq.s32.totalorder %s11, 0
    %p77 = por %p75, %p76
    %p78 = scmp.ne.s32.totalorder %s67, %s70
    %p79 = scmp.eq.s32.totalorder %s16, 3
    %p80 = por %p78, %p79
    %p81 = scmp.ne.s32.totalorder %s70, %s71
    %p82 = scmp.eq.s32.totalorder %s16, 0
    %p83 = por %p81, %p82
    %p84 = scmp.ne.s32.totalorder %s70, %s71
    %p85 = scmp.eq.s32.totalorder %s17, 3
    %p86 = por %p84, %p85
    %p88 = scmp.ne.s32.totalorder %s71, %s87
    %p89 = scmp.eq.s32.totalorder %s17, 0
    %p90 = por %p88, %p89
    %s91 = sadd.s32 %s19, 1
    %s92 = smul.u32 %s91, 8
    %s93 = sadd.s32 %s92, 1
    %s94 = sadd.s32 %s26, 1
    %s95 = smul.u32 %s94, 8
    %s96 = sadd.s32 %s95, 1
    %s97 = ssub.s32 %s18, %s30
    %s98 = ssub.s32 %s93, %s96
    %s99 = sor.u32 %s97, %s98
    %p100 = scmp.eq.s32.totalorder %s99, 0
    %s102 = sadd.s32 %s101, 1
    %s103 = scalar_select %p100, %s101, %s102
    %p106 = pneg %p100
    %p107 = scmp.eq.s32.totalorder %s11, 3
    %p108 = por %p106, %p107
    %p109 = scmp.ne.s32.totalorder %s101, %s104
    %p110 = scmp.eq.s32.totalorder %s11, 0
    %p111 = por %p109, %p110
    %p112 = scmp.ne.s32.totalorder %s101, %s104
    %p113 = scmp.eq.s32.totalorder %s16, 3
    %p114 = por %p112, %p113
    %p115 = scmp.ne.s32.totalorder %s104, %s105
    %p116 = scmp.eq.s32.totalorder %s16, 0
    %p117 = por %p115, %p116
    %p118 = scmp.ne.s32.totalorder %s104, %s105
    %p119 = scmp.eq.s32.totalorder %s17, 3
    %p120 = por %p118, %p119
    %p122 = scmp.ne.s32.totalorder %s105, %s121
    %p123 = scmp.eq.s32.totalorder %s17, 0
    %p124 = por %p122, %p123
    %s126 = sadd.s32 %s125, 1
    %p129 = scmp.eq.s32.totalorder %s11, 3
    %p130 = scmp.ne.s32.totalorder %s125, %s127
    %p131 = scmp.eq.s32.totalorder %s11, 0
    %p132 = por %p130, %p131
    %p133 = scmp.ne.s32.totalorder %s125, %s127
    %p134 = scmp.eq.s32.totalorder %s16, 3
    %p135 = por %p133, %p134
    %p136 = scmp.ne.s32.totalorder %s127, %s128
    %p137 = scmp.eq.s32.totalorder %s16, 0
    %p138 = por %p136, %p137
    %p139 = scmp.ne.s32.totalorder %s127, %s128
    %p140 = scmp.eq.s32.totalorder %s17, 3
    %p141 = por %p139, %p140
    %p143 = scmp.ne.s32.totalorder %s128, %s142
    %p144 = scmp.eq.s32.totalorder %s17, 0
    %p145 = por %p143, %p144
    %s147 = sadd.s32 %s146, 1
    %p150 = scmp.eq.s32.totalorder %s11, 3
    %p151 = scmp.ne.s32.totalorder %s146, %s148
    %p152 = scmp.eq.s32.totalorder %s11, 0
    %p153 = por %p151, %p152
    %p154 = scmp.ne.s32.totalorder %s146, %s148
    %p155 = scmp.eq.s32.totalorder %s16, 3
    %p156 = por %p154, %p155
    %p157 = scmp.ne.s32.totalorder %s148, %s149
    %p158 = scmp.eq.s32.totalorder %s16, 0
    %p159 = por %p157, %p158
    %p160 = scmp.ne.s32.totalorder %s148, %s149
    %p161 = scmp.eq.s32.totalorder %s17, 3
    %p162 = por %p160, %p161
    %p164 = scmp.ne.s32.totalorder %s149, %s163
    %p165 = scmp.eq.s32.totalorder %s17, 0
    %p166 = por %p164, %p165
    %s167 = ssub.s32 %s18, %s30
    %s168 = ssub.s32 %s19, %s26
    %s169 = sor.u32 %s167, %s168
    %p170 = scmp.eq.s32.totalorder %s169, 0
    %s172 = sadd.s32 %s171, 1
    %s173 = scalar_select %p170, %s171, %s172
    %p176 = pneg %p170
    %p177 = scmp.eq.s32.totalorder %s11, 3
    %p178 = por %p176, %p177
    %p179 = scmp.ne.s32.totalorder %s171, %s174
    %p180 = scmp.eq.s32.totalorder %s11, 0
    %p181 = por %p179, %p180
    %p182 = scmp.ne.s32.totalorder %s171, %s174
    %p183 = scmp.eq.s32.totalorder %s16, 3
    %p184 = por %p182, %p183
    %p185 = scmp.ne.s32.totalorder %s174, %s175
    %p186 = scmp.eq.s32.totalorder %s16, 0
    %p187 = por %p185, %p186
    %p188 = scmp.ne.s32.totalorder %s174, %s175
    %p189 = scmp.eq.s32.totalorder %s17, 3
    %p190 = por %p188, %p189
    %p192 = scmp.ne.s32.totalorder %s175, %s191
    %p193 = scmp.eq.s32.totalorder %s17, 0
    %p194 = por %p192, %p193
    %p195 = scmp.le.s32.totalorder 1, %s11
    %p196 = scmp.lt.s32.totalorder %s11, 5
    %p197 = pnand %p195, %p196
    %p198 = pneg %p197
    // Predicated region
    $region9: #{tpu_custom_call.1} parent=5 // pred_check
      _
    $region10: #{tpu_custom_call.1} parent=5 // pred_check_branch
      %200 = sbr.rel (%p197) target = $region12
    $region11: #{tpu_custom_call.1} parent=5 // pred_region
      %s201 = ssub.s32 %s11, 1
      // Predicated region
      $region13: #{tpu_custom_call.1} parent=11 // pred_check
        %p202 = pneg %p138
      $region14: #{tpu_custom_call.1} parent=11 // pred_check_branch
        %204 = sbr.rel (%p202) target = $region16
      $region15: #{tpu_custom_call.1} parent=11 // pred_region
        _
      $region16: #{tpu_custom_call.1} parent=11 // pred_fallthru
        _
      // Predicated region
      $region17: #{tpu_custom_call.1} parent=11 // pred_check
        %p205 = pneg %p159
      $region18: #{tpu_custom_call.1} parent=11 // pred_check_branch
        %207 = sbr.rel (%p205) target = $region20
      $region19: #{tpu_custom_call.1} parent=11 // pred_region
        _
      $region20: #{tpu_custom_call.1} parent=11 // pred_fallthru
        _
    $region12: #{tpu_custom_call.1} parent=5 // pred_fallthru
      _
    %p208 = scmp.lt.s32.totalorder %s11, 4
    // Predicated region
    $region21: #{tpu_custom_call.1} parent=5 // pred_check
      %p209 = pneg %p208
    $region22: #{tpu_custom_call.1} parent=5 // pred_check_branch
      %211 = sbr.rel (%p209) target = $region24
    $region23: #{tpu_custom_call.1} parent=5 // pred_region
      // Predicated region
      $region25: #{tpu_custom_call.1} parent=23 // pred_check
        %p212 = pneg %p45
      $region26: #{tpu_custom_call.1} parent=23 // pred_check_branch
        %214 = sbr.rel (%p212) target = $region28
      $region27: #{tpu_custom_call.1} parent=23 // pred_region
        %s215 = smul.u32 8, %s19
        %s216 = ssub.s32 18, %s215
        %p217 = scmp.lt.s32.totalorder %s216, 8
        %s218 = scalar_select %p217, %s216, 8
        %s219 = smul.u32 8, %s218
        %s220 = smul.u32 %s219, 3
        %p221 = scmp.lt.s32.totalorder %s18, 1
        %s222 = scalar_select %p221, %s18, 1
        %p223 = scmp.lt.s32.totalorder %s215, 17
        %s224 = scalar_select %p223, %s215, 17
        %s225 = smul.addr %s224, 3
        %s226 = smul.addr %s222, 54
        %s227 = sadd.s32 %s225, %s226
        %s228 = smul.addr %s227, 8
        %s229 = scalar_lea.vmem %s0, %s228
        %s230 = smul.u32 8, %s19
        %s231 = ssub.s32 18, %s230
        %p232 = scmp.lt.s32.totalorder %s231, 8
        %s233 = scalar_select %p232, %s231, 8
        %s234 = smul.u32 8, %s233
        %s235 = smul.u32 %s234, 3
      $region28: #{tpu_custom_call.1} parent=23 // pred_fallthru
        _
      // Predicated region
      $region29: #{tpu_custom_call.1} parent=23 // pred_check
        %p236 = pneg %p77
      $region30: #{tpu_custom_call.1} parent=23 // pred_check_branch
        %238 = sbr.rel (%p236) target = $region32
      $region31: #{tpu_custom_call.1} parent=23 // pred_region
        %s239 = sadd.s32 %s19, 1
        %s240 = smul.u32 %s239, 8
        %p241 = scmp.lt.s32.totalorder %s18, 1
        %s242 = scalar_select %p241, %s18, 1
        %p243 = scmp.lt.s32.totalorder %s240, 17
        %s244 = scalar_select %p243, %s240, 17
        %s245 = smul.addr %s244, 3
        %s246 = smul.addr %s242, 54
        %s247 = sadd.s32 %s245, %s246
        %s248 = smul.addr %s247, 8
        %s249 = scalar_lea.vmem %s1, %s248
        %s250 = sadd.s32 %s19, 1
        %s251 = smul.u32 %s250, 8
      $region32: #{tpu_custom_call.1} parent=23 // pred_fallthru
        _
      // Predicated region
      $region33: #{tpu_custom_call.1} parent=23 // pred_check
        %p252 = pneg %p111
      $region34: #{tpu_custom_call.1} parent=23 // pred_check_branch
        %254 = sbr.rel (%p252) target = $region36
      $region35: #{tpu_custom_call.1} parent=23 // pred_region
        %s255 = sadd.s32 %s19, 1
        %s256 = smul.u32 %s255, 8
        %s257 = sadd.s32 %s256, 1
        %p258 = scmp.lt.s32.totalorder %s18, 1
        %s259 = scalar_select %p258, %s18, 1
        %p260 = scmp.lt.s32.totalorder %s257, 17
        %s261 = scalar_select %p260, %s257, 17
        %s262 = smul.addr %s261, 3
        %s263 = smul.addr %s259, 54
        %s264 = sadd.s32 %s262, %s263
        %s265 = smul.addr %s264, 8
        %s266 = scalar_lea.vmem %s2, %s265
        %s267 = sadd.s32 %s19, 1
        %s268 = smul.u32 %s267, 8
        %s269 = sadd.s32 %s268, 1
      $region36: #{tpu_custom_call.1} parent=23 // pred_fallthru
        _
    $region24: #{tpu_custom_call.1} parent=5 // pred_fallthru
      _
    %p270 = scmp.le.s32.totalorder 1, %s11
    %p271 = scmp.lt.s32.totalorder %s11, 5
    %p272 = pnand %p270, %p271
    %p273 = pneg %p272
    // Predicated region
    $region37: #{tpu_custom_call.1} parent=5 // pred_check
      _
    $region38: #{tpu_custom_call.1} parent=5 // pred_check_branch
      %275 = sbr.rel (%p272) target = $region40
    $region39: #{tpu_custom_call.1} parent=5 // pred_region
      %s276 = ssub.s32 %s11, 1
      %s277 = smul.u32 8, %s21
      %s278 = ssub.s32 18, %s277
      %p279 = scmp.lt.s32.totalorder %s278, 8
      %s280 = scalar_select %p279, %s278, 8
      %s281 = smul.u32 8, %s280
      %s282 = smul.u32 %s281, 3
      %p283 = scmp.lt.s32.totalorder %s20, 1
      %s284 = scalar_select %p283, %s20, 1
      %p285 = scmp.lt.s32.totalorder %s277, 17
      %s286 = scalar_select %p285, %s277, 17
      %s287 = smul.addr %s286, 3
      %s288 = smul.addr %s284, 54
      %s289 = sadd.s32 %s287, %s288
      %s290 = smul.addr %s289, 8
      %s291 = scalar_lea.vmem %s0, %s290
      %p292 = pneg %p51
      %p293 = pneg %p48
      %s294 = sadd.s32 %s21, 1
      %s295 = smul.u32 %s294, 8
      %p296 = scmp.lt.s32.totalorder %s20, 1
      %s297 = scalar_select %p296, %s20, 1
      %p298 = scmp.lt.s32.totalorder %s295, 17
      %s299 = scalar_select %p298, %s295, 17
      %s300 = smul.addr %s299, 3
      %s301 = smul.addr %s297, 54
      %s302 = sadd.s32 %s300, %s301
      %s303 = smul.addr %s302, 8
      %s304 = scalar_lea.vmem %s1, %s303
      %p305 = pneg %p83
      %p306 = pneg %p80
      %s307 = sadd.s32 %s21, 1
      %s308 = smul.u32 %s307, 8
      %s309 = sadd.s32 %s308, 1
      %p310 = scmp.lt.s32.totalorder %s20, 1
      %s311 = scalar_select %p310, %s20, 1
      %p312 = scmp.lt.s32.totalorder %s309, 17
      %s313 = scalar_select %p312, %s309, 17
      %s314 = smul.addr %s313, 3
      %s315 = smul.addr %s311, 54
      %s316 = sadd.s32 %s314, %s315
      %s317 = smul.addr %s316, 8
      %s318 = scalar_lea.vmem %s2, %s317
      %p319 = pneg %p117
      %p320 = pneg %p114
      %p321 = pneg %p138
      %p322 = pneg %p135
      %p323 = pneg %p159
      %p324 = pneg %p156
      %p325 = pneg %p187
      %p326 = pneg %p184
      %s327 = smul.u32 8, %s21
      %p328 = scmp.lt.s32.totalorder %s20, 1
      %s329 = scalar_select %p328, %s20, 1
      %p330 = scmp.lt.s32.totalorder %s327, 15
      %s331 = scalar_select %p330, %s327, 15
      %s332 = smul.addr %s331, 4
      %s333 = smul.addr %s329, 64
      %s334 = sadd.s32 %s332, %s333
      %s335 = smul.addr %s334, 8
      %s336 = scalar_lea.vmem %s5, %s335
      %s337 = smul.u32 8, %s21
      %s338 = ssub.s32 18, %s337
      %p339 = scmp.lt.s32.totalorder %s338, 8
      %s340 = scalar_select %p339, %s338, 8
      %s341 = smul.u32 8, %s340
      %s342 = smul.u32 %s341, 3
      %p343 = scmp.lt.s32.totalorder %s20, 1
      %s344 = scalar_select %p343, %s20, 1
      %p345 = scmp.lt.s32.totalorder %s337, 17
      %s346 = scalar_select %p345, %s337, 17
      %s347 = smul.addr %s346, 3
      %s348 = smul.addr %s344, 54
      %s349 = sadd.s32 %s347, %s348
      %s350 = smul.addr %s349, 8
      %s351 = scalar_lea.vmem %s0, %s350
      %s352 = smul.u32 8, %s21
      %s353 = ssub.s32 18, %s352
      %p354 = scmp.lt.s32.totalorder %s353, 8
      %s355 = scalar_select %p354, %s353, 8
      %s356 = smul.u32 8, %s355
      %s357 = smul.u32 %s356, 3
      %s358 = sadd.s32 %s21, 1
      %s359 = smul.u32 %s358, 8
      %p360 = scmp.lt.s32.totalorder %s20, 1
      %s361 = scalar_select %p360, %s20, 1
      %p362 = scmp.lt.s32.totalorder %s359, 17
      %s363 = scalar_select %p362, %s359, 17
      %s364 = smul.addr %s363, 3
      %s365 = smul.addr %s361, 54
      %s366 = sadd.s32 %s364, %s365
      %s367 = smul.addr %s366, 8
      %s368 = scalar_lea.vmem %s1, %s367
      %s369 = sadd.s32 %s21, 1
      %s370 = smul.u32 %s369, 8
      %s371 = sadd.s32 %s21, 1
      %s372 = smul.u32 %s371, 8
      %s373 = sadd.s32 %s372, 1
      %p374 = scmp.lt.s32.totalorder %s20, 1
      %s375 = scalar_select %p374, %s20, 1
      %p376 = scmp.lt.s32.totalorder %s373, 17
      %s377 = scalar_select %p376, %s373, 17
      %s378 = smul.addr %s377, 3
      %s379 = smul.addr %s375, 54
      %s380 = sadd.s32 %s378, %s379
      %s381 = smul.addr %s380, 8
      %s382 = scalar_lea.vmem %s2, %s381
      %s383 = sadd.s32 %s21, 1
      %s384 = smul.u32 %s383, 8
      %s385 = sadd.s32 %s384, 1
      %s386 = smul.u32 8, %s21
      %p387 = scmp.lt.s32.totalorder %s20, 1
      %s388 = scalar_select %p387, %s20, 1
      %p389 = scmp.lt.s32.totalorder %s386, 15
      %s390 = scalar_select %p389, %s386, 15
      %s391 = smul.addr %s390, 4
      %s392 = smul.addr %s388, 64
      %s393 = sadd.s32 %s391, %s392
      %s394 = smul.addr %s393, 8
      %s395 = scalar_lea.vmem %s5, %s394
      %s396 = smul.u32 8, %s21
      %v397 = vld [vmem:[%s351] sm:$0xff]
      %v398 = vld [vmem:[%s351 + $0x8] sm:$0xff]
      %v399 = vld [vmem:[%s351 + $0x10] sm:$0x3]
      %v400 = vld [vmem:[%s351 + $0x18] sm:$0xff]
      %v401 = vld [vmem:[%s351 + $0x20] sm:$0xff]
      %v402 = vld [vmem:[%s351 + $0x28] sm:$0x3]
      %v403 = vld [vmem:[%s351 + $0x30] sm:$0xff]
      %v404 = vld [vmem:[%s351 + $0x38] sm:$0xff]
      %v405 = vld [vmem:[%s351 + $0x40] sm:$0x3]
      %v406 = vld [vmem:[%s351 + $0x48] sm:$0xff]
      %v407 = vld [vmem:[%s351 + $0x50] sm:$0xff]
      %v408 = vld [vmem:[%s351 + $0x58] sm:$0x3]
      %v409 = vld [vmem:[%s351 + $0x60] sm:$0xff]
      %v410 = vld [vmem:[%s351 + $0x68] sm:$0xff]
      %v411 = vld [vmem:[%s351 + $0x70] sm:$0x3]
      %v412 = vld [vmem:[%s351 + $0x78] sm:$0xff]
      %v413 = vld [vmem:[%s351 + $0x80] sm:$0xff]
      %v414 = vld [vmem:[%s351 + $0x88] sm:$0x3]
      %v415 = vld [vmem:[%s351 + $0x90] sm:$0xff]
      %v416 = vld [vmem:[%s351 + $0x98] sm:$0xff]
      %v417 = vld [vmem:[%s351 + $0xa0] sm:$0x3]
      %v418 = vld [vmem:[%s351 + $0xa8] sm:$0xff]
      %v419 = vld [vmem:[%s351 + $0xb0] sm:$0xff]
      %v420 = vld [vmem:[%s351 + $0xb8] sm:$0x3]
      %vm421 = vcmask 31744
      %422 = vst.msk [vmem:[#allocation2] sm:$0xff] %vm421, %v397
      %423 = vst.msk [vmem:[#allocation2 + $0x8] sm:$0xff] %vm421, %v398
      %vm424 = vcmask 25600
      %425 = vst.msk [vmem:[#allocation2 + $0x10] sm:$0x3] %vm424, %v399
      %426 = vst.msk [vmem:[#allocation2 + $0x18] sm:$0xff] %vm421, %v400
      %427 = vst.msk [vmem:[#allocation2 + $0x20] sm:$0xff] %vm421, %v401
      %428 = vst.msk [vmem:[#allocation2 + $0x28] sm:$0x3] %vm424, %v402
      %429 = vst.msk [vmem:[#allocation2 + $0x30] sm:$0xff] %vm421, %v403
      %430 = vst.msk [vmem:[#allocation2 + $0x38] sm:$0xff] %vm421, %v404
      %431 = vst.msk [vmem:[#allocation2 + $0x40] sm:$0x3] %vm424, %v405
      %432 = vst.msk [vmem:[#allocation2 + $0x48] sm:$0xff] %vm421, %v406
      %433 = vst.msk [vmem:[#allocation2 + $0x50] sm:$0xff] %vm421, %v407
      %434 = vst.msk [vmem:[#allocation2 + $0x58] sm:$0x3] %vm424, %v408
      %435 = vst.msk [vmem:[#allocation2 + $0x60] sm:$0xff] %vm421, %v409
      %436 = vst.msk [vmem:[#allocation2 + $0x68] sm:$0xff] %vm421, %v410
      %437 = vst.msk [vmem:[#allocation2 + $0x70] sm:$0x3] %vm424, %v411
      %438 = vst.msk [vmem:[#allocation2 + $0x78] sm:$0xff] %vm421, %v412
      %439 = vst.msk [vmem:[#allocation2 + $0x80] sm:$0xff] %vm421, %v413
      %440 = vst.msk [vmem:[#allocation2 + $0x88] sm:$0x3] %vm424, %v414
      %441 = vst.msk [vmem:[#allocation2 + $0x90] sm:$0xff] %vm421, %v415
      %442 = vst.msk [vmem:[#allocation2 + $0x98] sm:$0xff] %vm421, %v416
      %443 = vst.msk [vmem:[#allocation2 + $0xa0] sm:$0x3] %vm424, %v417
      %444 = vst.msk [vmem:[#allocation2 + $0xa8] sm:$0xff] %vm421, %v418
      %445 = vst.msk [vmem:[#allocation2 + $0xb0] sm:$0xff] %vm421, %v419
      %446 = vst.msk [vmem:[#allocation2 + $0xb8] sm:$0x3] %vm424, %v420
      %v447 = vld [vmem:[%s368] sm:$0xff]
      %v448 = vld [vmem:[%s368 + $0x8] sm:$0xff]
      %v449 = vld [vmem:[%s368 + $0x10] sm:$0x3]
      %s450 = scalar_lea.vmem [#allocation2], 192
      %451 = vst.msk [vmem:[%s450] sm:$0xff] %vm421, %v447
      %452 = vst.msk [vmem:[%s450 + $0x8] sm:$0xff] %vm421, %v448
      %453 = vst.msk [vmem:[%s450 + $0x10] sm:$0x3] %vm424, %v449
      %v454 = vld [vmem:[%s382] sm:$0xff]
      %v455 = vld [vmem:[%s382 + $0x8] sm:$0xff]
      %v456 = vld [vmem:[%s382 + $0x10] sm:$0x3]
      %s457 = scalar_lea.vmem [#allocation2], 216
      %458 = vst.msk [vmem:[%s457] sm:$0xff] %vm421, %v454
      %459 = vst.msk [vmem:[%s457 + $0x8] sm:$0xff] %vm421, %v455
      %460 = vst.msk [vmem:[%s457 + $0x10] sm:$0x3] %vm424, %v456
      %v461 = vld [vmem:[%s4] sm:$0x1]
      %v462 = vld [vmem:[#allocation2] sm:$0xff]
      %v463 = vld [vmem:[#allocation2 + $0x8] sm:$0xff]
      %v464 = vld [vmem:[#allocation2 + $0x18] sm:$0xff]
      %v465 = vld [vmem:[#allocation2 + $0x20] sm:$0xff]
      %v466 = vld [vmem:[#allocation2 + $0x30] sm:$0xff]
      %v467 = vld [vmem:[#allocation2 + $0x38] sm:$0xff]
      %v468 = vld [vmem:[#allocation2 + $0x48] sm:$0xff]
      %v469 = vld [vmem:[#allocation2 + $0x50] sm:$0xff]
      %v470 = vld [vmem:[#allocation2 + $0x60] sm:$0xff]
      %v471 = vld [vmem:[#allocation2 + $0x68] sm:$0xff]
      %v472 = vld [vmem:[#allocation2 + $0x78] sm:$0xff]
      %v473 = vld [vmem:[#allocation2 + $0x80] sm:$0xff]
      %v474 = vld [vmem:[#allocation2 + $0x90] sm:$0xff]
      %v475 = vld [vmem:[#allocation2 + $0x98] sm:$0xff]
      %v476 = vld [vmem:[#allocation2 + $0xa8] sm:$0xff]
      %v477 = vld [vmem:[#allocation2 + $0xb0] sm:$0xff]
      %v478 = vld [vmem:[%s3] sm:$0xf]
      %v479 = vld [vmem:[#allocation2 + $0x1] sm:$0xff]
      %v480 = vld [vmem:[#allocation2 + $0x9] sm:$0xff]
      %v481 = vld [vmem:[#allocation2 + $0x19] sm:$0xff]
      %v482 = vld [vmem:[#allocation2 + $0x21] sm:$0xff]
      %v483 = vld [vmem:[#allocation2 + $0x31] sm:$0xff]
      %v484 = vld [vmem:[#allocation2 + $0x39] sm:$0xff]
      %v485 = vld [vmem:[#allocation2 + $0x49] sm:$0xff]
      %v486 = vld [vmem:[#allocation2 + $0x51] sm:$0xff]
      %v487 = vld [vmem:[#allocation2 + $0x61] sm:$0xff]
      %v488 = vld [vmem:[#allocation2 + $0x69] sm:$0xff]
      %v489 = vld [vmem:[#allocation2 + $0x79] sm:$0xff]
      %v490 = vld [vmem:[#allocation2 + $0x81] sm:$0xff]
      %v491 = vld [vmem:[#allocation2 + $0x91] sm:$0xff]
      %v492 = vld [vmem:[#allocation2 + $0x99] sm:$0xff]
      %v493 = vld [vmem:[#allocation2 + $0xa9] sm:$0xff]
      %v494 = vld [vmem:[#allocation2 + $0xb1] sm:$0xff]
      %s495 = scalar_lea.vmem %s3, 4
      %v496 = vld [vmem:[%s495] sm:$0xf]
      %v498 = vsel %vm421, %v479, 0
      %v501 = vsel %vm421, %v480, 0
      %v504 = vsel %vm421, %v481, 0
      %v507 = vsel %vm421, %v482, 0
      %v510 = vsel %vm421, %v483, 0
      %v513 = vsel %vm421, %v484, 0
      %v516 = vsel %vm421, %v485, 0
      %v519 = vsel %vm421, %v486, 0
      %v522 = vsel %vm421, %v487, 0
      %v525 = vsel %vm421, %v488, 0
      %v528 = vsel %vm421, %v489, 0
      %v531 = vsel %vm421, %v490, 0
      %v534 = vsel %vm421, %v491, 0
      %v537 = vsel %vm421, %v492, 0
      %v540 = vsel %vm421, %v493, 0
      %v543 = vsel %vm421, %v494, 0
      %vm545 = vcmask 1043456
      %v547 = vsel %vm545, %v496, 0
      %549 = vmatpush.msra.mxu0 0.0
      %550 = vmatpush.msra.mxu0 0.0
      %551 = vmatpush.msra.mxu0 0.0
      %552 = vmatpush.msra.mxu0 0.0
      %553 = vmatpush.msra.mxu0 0.0
      %554 = vmatpush.msra.mxu0 0.0
      %555 = vmatpush.msra.mxu0 0.0
      %556 = vmatpush.msra.mxu0 0.0
      %557 = vmatpush.msra.mxu0 0.0
      %558 = vmatpush.msra.mxu0 0.0
      %559 = vmatpush.msra.mxu0 0.0
      %560 = vmatpush.msra.mxu0 0.0
      %561 = vmatpush.msra.mxu0 0.0
      %562 = vmatpush.msra.mxu0 0.0
      %563 = vmatpush.msra.mxu0 0.0
      %564 = vmatpush.msra.mxu0 %v547
      %565 = vmatmul.f32.gmra.mxu0 %v498
      %v566 = vpop.f32.mrf.mxu0
      %v567 = vadd.f32 0.0, %v566
      %568 = vmatmul.f32.gmra.mxu0 %v501
      %v569 = vpop.f32.mrf.mxu0
      %v570 = vadd.f32 0.0, %v569
      %571 = vmatmul.f32.gmra.mxu0 %v504
      %v572 = vpop.f32.mrf.mxu0
      %v573 = vadd.f32 0.0, %v572
      %574 = vmatmul.f32.gmra.mxu0 %v507
      %v575 = vpop.f32.mrf.mxu0
      %v576 = vadd.f32 0.0, %v575
      %577 = vmatmul.f32.gmra.mxu0 %v510
      %v578 = vpop.f32.mrf.mxu0
      %v579 = vadd.f32 0.0, %v578
      %580 = vmatmul.f32.gmra.mxu0 %v513
      %v581 = vpop.f32.mrf.mxu0
      %v582 = vadd.f32 0.0, %v581
      %583 = vmatmul.f32.gmra.mxu0 %v516
      %v584 = vpop.f32.mrf.mxu0
      %v585 = vadd.f32 0.0, %v584
      %586 = vmatmul.f32.gmra.mxu0 %v519
      %v587 = vpop.f32.mrf.mxu0
      %v588 = vadd.f32 0.0, %v587
      %589 = vmatmul.f32.gmra.mxu0 %v522
      %v590 = vpop.f32.mrf.mxu0
      %v591 = vadd.f32 0.0, %v590
      %592 = vmatmul.f32.gmra.mxu0 %v525
      %v593 = vpop.f32.mrf.mxu0
      %v594 = vadd.f32 0.0, %v593
      %595 = vmatmul.f32.gmra.mxu0 %v528
      %v596 = vpop.f32.mrf.mxu0
      %v597 = vadd.f32 0.0, %v596
      %598 = vmatmul.f32.gmra.mxu0 %v531
      %v599 = vpop.f32.mrf.mxu0
      %v600 = vadd.f32 0.0, %v599
      %601 = vmatmul.f32.gmra.mxu0 %v534
      %v602 = vpop.f32.mrf.mxu0
      %v603 = vadd.f32 0.0, %v602
      %604 = vmatmul.f32.gmra.mxu0 %v537
      %v605 = vpop.f32.mrf.mxu0
      %v606 = vadd.f32 0.0, %v605
      %607 = vmatmul.f32.gmra.mxu0 %v540
      %v608 = vpop.f32.mrf.mxu0
      %v609 = vadd.f32 0.0, %v608
      %610 = vmatmul.f32.gmra.mxu0 %v543
      %v611 = vpop.f32.mrf.mxu0
      %v612 = vadd.f32 0.0, %v611
      %613 = vdwg.mxu0
      %v615 = vsel %vm421, %v462, 0
      %v618 = vsel %vm421, %v463, 0
      %v621 = vsel %vm421, %v464, 0
      %v624 = vsel %vm421, %v465, 0
      %v627 = vsel %vm421, %v466, 0
      %v630 = vsel %vm421, %v467, 0
      %v633 = vsel %vm421, %v468, 0
      %v636 = vsel %vm421, %v469, 0
      %v639 = vsel %vm421, %v470, 0
      %v642 = vsel %vm421, %v471, 0
      %v645 = vsel %vm421, %v472, 0
      %v648 = vsel %vm421, %v473, 0
      %v651 = vsel %vm421, %v474, 0
      %v654 = vsel %vm421, %v475, 0
      %v657 = vsel %vm421, %v476, 0
      %v660 = vsel %vm421, %v477, 0
      %v663 = vsel %vm545, %v478, 0
      %665 = vmatpush.msra.mxu0 0.0
      %666 = vmatpush.msra.mxu0 0.0
      %667 = vmatpush.msra.mxu0 0.0
      %668 = vmatpush.msra.mxu0 0.0
      %669 = vmatpush.msra.mxu0 0.0
      %670 = vmatpush.msra.mxu0 0.0
      %671 = vmatpush.msra.mxu0 0.0
      %672 = vmatpush.msra.mxu0 0.0
      %673 = vmatpush.msra.mxu0 0.0
      %674 = vmatpush.msra.mxu0 0.0
      %675 = vmatpush.msra.mxu0 0.0
      %676 = vmatpush.msra.mxu0 0.0
      %677 = vmatpush.msra.mxu0 0.0
      %678 = vmatpush.msra.mxu0 0.0
      %679 = vmatpush.msra.mxu0 0.0
      %680 = vmatpush.msra.mxu0 %v663
      %681 = vmatmul.f32.gmra.mxu0 %v615
      %v682 = vpop.f32.mrf.mxu0
      %v683 = vadd.f32 %v567, %v682
      %684 = vmatmul.f32.gmra.mxu0 %v618
      %v685 = vpop.f32.mrf.mxu0
      %v686 = vadd.f32 %v570, %v685
      %687 = vmatmul.f32.gmra.mxu0 %v621
      %v688 = vpop.f32.mrf.mxu0
      %v689 = vadd.f32 %v573, %v688
      %690 = vmatmul.f32.gmra.mxu0 %v624
      %v691 = vpop.f32.mrf.mxu0
      %v692 = vadd.f32 %v576, %v691
      %693 = vmatmul.f32.gmra.mxu0 %v627
      %v694 = vpop.f32.mrf.mxu0
      %v695 = vadd.f32 %v579, %v694
      %696 = vmatmul.f32.gmra.mxu0 %v630
      %v697 = vpop.f32.mrf.mxu0
      %v698 = vadd.f32 %v582, %v697
      %699 = vmatmul.f32.gmra.mxu0 %v633
      %v700 = vpop.f32.mrf.mxu0
      %v701 = vadd.f32 %v585, %v700
      %702 = vmatmul.f32.gmra.mxu0 %v636
      %v703 = vpop.f32.mrf.mxu0
      %v704 = vadd.f32 %v588, %v703
      %705 = vmatmul.f32.gmra.mxu0 %v639
      %v706 = vpop.f32.mrf.mxu0
      %v707 = vadd.f32 %v591, %v706
      %708 = vmatmul.f32.gmra.mxu0 %v642
      %v709 = vpop.f32.mrf.mxu0
      %v710 = vadd.f32 %v594, %v709
      %711 = vmatmul.f32.gmra.mxu0 %v645
      %v712 = vpop.f32.mrf.mxu0
      %v713 = vadd.f32 %v597, %v712
      %714 = vmatmul.f32.gmra.mxu0 %v648
      %v715 = vpop.f32.mrf.mxu0
      %v716 = vadd.f32 %v600, %v715
      %717 = vmatmul.f32.gmra.mxu0 %v651
      %v718 = vpop.f32.mrf.mxu0
      %v719 = vadd.f32 %v603, %v718
      %720 = vmatmul.f32.gmra.mxu0 %v654
      %v721 = vpop.f32.mrf.mxu0
      %v722 = vadd.f32 %v606, %v721
      %723 = vmatmul.f32.gmra.mxu0 %v657
      %v724 = vpop.f32.mrf.mxu0
      %v725 = vadd.f32 %v609, %v724
      %726 = vmatmul.f32.gmra.mxu0 %v660
      %v727 = vpop.f32.mrf.mxu0
      %v728 = vadd.f32 %v612, %v727
      %729 = vdwg.mxu0
      %s730 = scalar_lea.vmem [#allocation2], 24
      %v731 = vld [vmem:[%s730] sm:$0xff]
      %v732 = vld [vmem:[%s730 + $0x8] sm:$0xff]
      %v733 = vld [vmem:[%s730 + $0x18] sm:$0xff]
      %v734 = vld [vmem:[%s730 + $0x20] sm:$0xff]
      %v735 = vld [vmem:[%s730 + $0x30] sm:$0xff]
      %v736 = vld [vmem:[%s730 + $0x38] sm:$0xff]
      %v737 = vld [vmem:[%s730 + $0x48] sm:$0xff]
      %v738 = vld [vmem:[%s730 + $0x50] sm:$0xff]
      %v739 = vld [vmem:[%s730 + $0x60] sm:$0xff]
      %v740 = vld [vmem:[%s730 + $0x68] sm:$0xff]
      %v741 = vld [vmem:[%s730 + $0x78] sm:$0xff]
      %v742 = vld [vmem:[%s730 + $0x80] sm:$0xff]
      %v743 = vld [vmem:[%s730 + $0x90] sm:$0xff]
      %v744 = vld [vmem:[%s730 + $0x98] sm:$0xff]
      %v745 = vld [vmem:[%s730 + $0xa8] sm:$0xff]
      %v746 = vld [vmem:[%s730 + $0xb0] sm:$0xff]
      %s747 = scalar_lea.vmem %s3, 8
      %v748 = vld [vmem:[%s747] sm:$0xf]
      %v750 = vsel %vm421, %v731, 0
      %v753 = vsel %vm421, %v732, 0
      %v756 = vsel %vm421, %v733, 0
      %v759 = vsel %vm421, %v734, 0
      %v762 = vsel %vm421, %v735, 0
      %v765 = vsel %vm421, %v736, 0
      %v768 = vsel %vm421, %v737, 0
      %v771 = vsel %vm421, %v738, 0
      %v774 = vsel %vm421, %v739, 0
      %v777 = vsel %vm421, %v740, 0
      %v780 = vsel %vm421, %v741, 0
      %v783 = vsel %vm421, %v742, 0
      %v786 = vsel %vm421, %v743, 0
      %v789 = vsel %vm421, %v744, 0
      %v792 = vsel %vm421, %v745, 0
      %v795 = vsel %vm421, %v746, 0
      %v798 = vsel %vm545, %v748, 0
      %800 = vmatpush.msra.mxu0 0.0
      %801 = vmatpush.msra.mxu0 0.0
      %802 = vmatpush.msra.mxu0 0.0
      %803 = vmatpush.msra.mxu0 0.0
      %804 = vmatpush.msra.mxu0 0.0
      %805 = vmatpush.msra.mxu0 0.0
      %806 = vmatpush.msra.mxu0 0.0
      %807 = vmatpush.msra.mxu0 0.0
      %808 = vmatpush.msra.mxu0 0.0
      %809 = vmatpush.msra.mxu0 0.0
      %810 = vmatpush.msra.mxu0 0.0
      %811 = vmatpush.msra.mxu0 0.0
      %812 = vmatpush.msra.mxu0 0.0
      %813 = vmatpush.msra.mxu0 0.0
      %814 = vmatpush.msra.mxu0 0.0
      %815 = vmatpush.msra.mxu0 %v798
      %816 = vmatmul.f32.gmra.mxu0 %v750
      %v817 = vpop.f32.mrf.mxu0
      %v818 = vadd.f32 0.0, %v817
      %819 = vmatmul.f32.gmra.mxu0 %v753
      %v820 = vpop.f32.mrf.mxu0
      %v821 = vadd.f32 0.0, %v820
      %822 = vmatmul.f32.gmra.mxu0 %v756
      %v823 = vpop.f32.mrf.mxu0
      %v824 = vadd.f32 0.0, %v823
      %825 = vmatmul.f32.gmra.mxu0 %v759
      %v826 = vpop.f32.mrf.mxu0
      %v827 = vadd.f32 0.0, %v826
      %828 = vmatmul.f32.gmra.mxu0 %v762
      %v829 = vpop.f32.mrf.mxu0
      %v830 = vadd.f32 0.0, %v829
      %831 = vmatmul.f32.gmra.mxu0 %v765
      %v832 = vpop.f32.mrf.mxu0
      %v833 = vadd.f32 0.0, %v832
      %834 = vmatmul.f32.gmra.mxu0 %v768
      %v835 = vpop.f32.mrf.mxu0
      %v836 = vadd.f32 0.0, %v835
      %837 = vmatmul.f32.gmra.mxu0 %v771
      %v838 = vpop.f32.mrf.mxu0
      %v839 = vadd.f32 0.0, %v838
      %840 = vmatmul.f32.gmra.mxu0 %v774
      %v841 = vpop.f32.mrf.mxu0
      %v842 = vadd.f32 0.0, %v841
      %843 = vmatmul.f32.gmra.mxu0 %v777
      %v844 = vpop.f32.mrf.mxu0
      %v845 = vadd.f32 0.0, %v844
      %846 = vmatmul.f32.gmra.mxu0 %v780
      %v847 = vpop.f32.mrf.mxu0
      %v848 = vadd.f32 0.0, %v847
      %849 = vmatmul.f32.gmra.mxu0 %v783
      %v850 = vpop.f32.mrf.mxu0
      %v851 = vadd.f32 0.0, %v850
      %852 = vmatmul.f32.gmra.mxu0 %v786
      %v853 = vpop.f32.mrf.mxu0
      %v854 = vadd.f32 0.0, %v853
      %855 = vmatmul.f32.gmra.mxu0 %v789
      %v856 = vpop.f32.mrf.mxu0
      %v857 = vadd.f32 0.0, %v856
      %858 = vmatmul.f32.gmra.mxu0 %v792
      %v859 = vpop.f32.mrf.mxu0
      %v860 = vadd.f32 0.0, %v859
      %861 = vmatmul.f32.gmra.mxu0 %v795
      %v862 = vpop.f32.mrf.mxu0
      %v863 = vadd.f32 0.0, %v862
      %864 = vdwg.mxu0
      %v865 = vadd.f32 %v683, %v818
      %v866 = vadd.f32 %v686, %v821
      %v867 = vadd.f32 %v689, %v824
      %v868 = vadd.f32 %v692, %v827
      %v869 = vadd.f32 %v695, %v830
      %v870 = vadd.f32 %v698, %v833
      %v871 = vadd.f32 %v701, %v836
      %v872 = vadd.f32 %v704, %v839
      %v873 = vadd.f32 %v707, %v842
      %v874 = vadd.f32 %v710, %v845
      %v875 = vadd.f32 %v713, %v848
      %v876 = vadd.f32 %v716, %v851
      %v877 = vadd.f32 %v719, %v854
      %v878 = vadd.f32 %v722, %v857
      %v879 = vadd.f32 %v725, %v860
      %v880 = vadd.f32 %v728, %v863
      %v881 = vld [vmem:[%s730 + $0x1] sm:$0xff]
      %v882 = vld [vmem:[%s730 + $0x9] sm:$0xff]
      %v883 = vld [vmem:[%s730 + $0x19] sm:$0xff]
      %v884 = vld [vmem:[%s730 + $0x21] sm:$0xff]
      %v885 = vld [vmem:[%s730 + $0x31] sm:$0xff]
      %v886 = vld [vmem:[%s730 + $0x39] sm:$0xff]
      %v887 = vld [vmem:[%s730 + $0x49] sm:$0xff]
      %v888 = vld [vmem:[%s730 + $0x51] sm:$0xff]
      %v889 = vld [vmem:[%s730 + $0x61] sm:$0xff]
      %v890 = vld [vmem:[%s730 + $0x69] sm:$0xff]
      %v891 = vld [vmem:[%s730 + $0x79] sm:$0xff]
      %v892 = vld [vmem:[%s730 + $0x81] sm:$0xff]
      %v893 = vld [vmem:[%s730 + $0x91] sm:$0xff]
      %v894 = vld [vmem:[%s730 + $0x99] sm:$0xff]
      %v895 = vld [vmem:[%s730 + $0xa9] sm:$0xff]
      %v896 = vld [vmem:[%s730 + $0xb1] sm:$0xff]
      %s897 = scalar_lea.vmem %s3, 12
      %v898 = vld [vmem:[%s897] sm:$0xf]
      %v900 = vsel %vm421, %v881, 0
      %v903 = vsel %vm421, %v882, 0
      %v906 = vsel %vm421, %v883, 0
      %v909 = vsel %vm421, %v884, 0
      %v912 = vsel %vm421, %v885, 0
      %v915 = vsel %vm421, %v886, 0
      %v918 = vsel %vm421, %v887, 0
      %v921 = vsel %vm421, %v888, 0
      %v924 = vsel %vm421, %v889, 0
      %v927 = vsel %vm421, %v890, 0
      %v930 = vsel %vm421, %v891, 0
      %v933 = vsel %vm421, %v892, 0
      %v936 = vsel %vm421, %v893, 0
      %v939 = vsel %vm421, %v894, 0
      %v942 = vsel %vm421, %v895, 0
      %v945 = vsel %vm421, %v896, 0
      %v948 = vsel %vm545, %v898, 0
      %950 = vmatpush.msra.mxu0 0.0
      %951 = vmatpush.msra.mxu0 0.0
      %952 = vmatpush.msra.mxu0 0.0
      %953 = vmatpush.msra.mxu0 0.0
      %954 = vmatpush.msra.mxu0 0.0
      %955 = vmatpush.msra.mxu0 0.0
      %956 = vmatpush.msra.mxu0 0.0
      %957 = vmatpush.msra.mxu0 0.0
      %958 = vmatpush.msra.mxu0 0.0
      %959 = vmatpush.msra.mxu0 0.0
      %960 = vmatpush.msra.mxu0 0.0
      %961 = vmatpush.msra.mxu0 0.0
      %962 = vmatpush.msra.mxu0 0.0
      %963 = vmatpush.msra.mxu0 0.0
      %964 = vmatpush.msra.mxu0 0.0
      %965 = vmatpush.msra.mxu0 %v948
      %966 = vmatmul.f32.gmra.mxu0 %v900
      %v967 = vpop.f32.mrf.mxu0
      %v968 = vadd.f32 0.0, %v967
      %969 = vmatmul.f32.gmra.mxu0 %v903
      %v970 = vpop.f32.mrf.mxu0
      %v971 = vadd.f32 0.0, %v970
      %972 = vmatmul.f32.gmra.mxu0 %v906
      %v973 = vpop.f32.mrf.mxu0
      %v974 = vadd.f32 0.0, %v973
      %975 = vmatmul.f32.gmra.mxu0 %v909
      %v976 = vpop.f32.mrf.mxu0
      %v977 = vadd.f32 0.0, %v976
      %978 = vmatmul.f32.gmra.mxu0 %v912
      %v979 = vpop.f32.mrf.mxu0
      %v980 = vadd.f32 0.0, %v979
      %981 = vmatmul.f32.gmra.mxu0 %v915
      %v982 = vpop.f32.mrf.mxu0
      %v983 = vadd.f32 0.0, %v982
      %984 = vmatmul.f32.gmra.mxu0 %v918
      %v985 = vpop.f32.mrf.mxu0
      %v986 = vadd.f32 0.0, %v985
      %987 = vmatmul.f32.gmra.mxu0 %v921
      %v988 = vpop.f32.mrf.mxu0
      %v989 = vadd.f32 0.0, %v988
      %990 = vmatmul.f32.gmra.mxu0 %v924
      %v991 = vpop.f32.mrf.mxu0
      %v992 = vadd.f32 0.0, %v991
      %993 = vmatmul.f32.gmra.mxu0 %v927
      %v994 = vpop.f32.mrf.mxu0
      %v995 = vadd.f32 0.0, %v994
      %996 = vmatmul.f32.gmra.mxu0 %v930
      %v997 = vpop.f32.mrf.mxu0
      %v998 = vadd.f32 0.0, %v997
      %999 = vmatmul.f32.gmra.mxu0 %v933
      %v1000 = vpop.f32.mrf.mxu0
      %v1001 = vadd.f32 0.0, %v1000
      %1002 = vmatmul.f32.gmra.mxu0 %v936
      %v1003 = vpop.f32.mrf.mxu0
      %v1004 = vadd.f32 0.0, %v1003
      %1005 = vmatmul.f32.gmra.mxu0 %v939
      %v1006 = vpop.f32.mrf.mxu0
      %v1007 = vadd.f32 0.0, %v1006
      %1008 = vmatmul.f32.gmra.mxu0 %v942
      %v1009 = vpop.f32.mrf.mxu0
      %v1010 = vadd.f32 0.0, %v1009
      %1011 = vmatmul.f32.gmra.mxu0 %v945
      %v1012 = vpop.f32.mrf.mxu0
      %v1013 = vadd.f32 0.0, %v1012
      %1014 = vdwg.mxu0
      %v1015 = vadd.f32 %v865, %v968
      %v1016 = vadd.f32 %v866, %v971
      %v1017 = vadd.f32 %v867, %v974
      %v1018 = vadd.f32 %v868, %v977
      %v1019 = vadd.f32 %v869, %v980
      %v1020 = vadd.f32 %v870, %v983
      %v1021 = vadd.f32 %v871, %v986
      %v1022 = vadd.f32 %v872, %v989
      %v1023 = vadd.f32 %v873, %v992
      %v1024 = vadd.f32 %v874, %v995
      %v1025 = vadd.f32 %v875, %v998
      %v1026 = vadd.f32 %v876, %v1001
      %v1027 = vadd.f32 %v877, %v1004
      %v1028 = vadd.f32 %v878, %v1007
      %v1029 = vadd.f32 %v879, %v1010
      %v1030 = vadd.f32 %v880, %v1013
      %v1032 = vperm.slane %v461, 0
      %v1034 = vadd.f32 %v1015, %v1032
      %v1035 = vadd.f32 %v1016, %v1032
      %v1036 = vadd.f32 %v1017, %v1032
      %v1037 = vadd.f32 %v1018, %v1032
      %v1038 = vadd.f32 %v1019, %v1032
      %v1039 = vadd.f32 %v1020, %v1032
      %v1040 = vadd.f32 %v1021, %v1032
      %v1041 = vadd.f32 %v1022, %v1032
      %v1042 = vadd.f32 %v1023, %v1032
      %v1043 = vadd.f32 %v1024, %v1032
      %v1044 = vadd.f32 %v1025, %v1032
      %v1045 = vadd.f32 %v1026, %v1032
      %v1046 = vadd.f32 %v1027, %v1032
      %v1047 = vadd.f32 %v1028, %v1032
      %v1048 = vadd.f32 %v1029, %v1032
      %v1049 = vadd.f32 %v1030, %v1032
      %s1050 = scalar_lea.vmem %s3, 16
      %v1051 = vld [vmem:[%s1050] sm:$0xf]
      %v1052 = vld [vmem:[#allocation2 + $0x2] sm:$0xff]
      %v1053 = vld [vmem:[#allocation2 + $0xa] sm:$0xff]
      %v1054 = vld [vmem:[#allocation2 + $0x1a] sm:$0xff]
      %v1055 = vld [vmem:[#allocation2 + $0x22] sm:$0xff]
      %v1056 = vld [vmem:[#allocation2 + $0x32] sm:$0xff]
      %v1057 = vld [vmem:[#allocation2 + $0x3a] sm:$0xff]
      %v1058 = vld [vmem:[#allocation2 + $0x4a] sm:$0xff]
      %v1059 = vld [vmem:[#allocation2 + $0x52] sm:$0xff]
      %v1060 = vld [vmem:[#allocation2 + $0x62] sm:$0xff]
      %v1061 = vld [vmem:[#allocation2 + $0x6a] sm:$0xff]
      %v1062 = vld [vmem:[#allocation2 + $0x7a] sm:$0xff]
      %v1063 = vld [vmem:[#allocation2 + $0x82] sm:$0xff]
      %v1064 = vld [vmem:[#allocation2 + $0x92] sm:$0xff]
      %v1065 = vld [vmem:[#allocation2 + $0x9a] sm:$0xff]
      %v1066 = vld [vmem:[#allocation2 + $0xaa] sm:$0xff]
      %v1067 = vld [vmem:[#allocation2 + $0xb2] sm:$0xff]
      %s1068 = scalar_lea.vmem %s3, 20
      %v1069 = vld [vmem:[%s1068] sm:$0xf]
      %v1071 = vsel %vm421, %v1052, 0
      %v1074 = vsel %vm421, %v1053, 0
      %v1077 = vsel %vm421, %v1054, 0
      %v1080 = vsel %vm421, %v1055, 0
      %v1083 = vsel %vm421, %v1056, 0
      %v1086 = vsel %vm421, %v1057, 0
      %v1089 = vsel %vm421, %v1058, 0
      %v1092 = vsel %vm421, %v1059, 0
      %v1095 = vsel %vm421, %v1060, 0
      %v1098 = vsel %vm421, %v1061, 0
      %v1101 = vsel %vm421, %v1062, 0
      %v1104 = vsel %vm421, %v1063, 0
      %v1107 = vsel %vm421, %v1064, 0
      %v1110 = vsel %vm421, %v1065, 0
      %v1113 = vsel %vm421, %v1066, 0
      %v1116 = vsel %vm421, %v1067, 0
      %v1119 = vsel %vm545, %v1069, 0
      %1121 = vmatpush.msra.mxu0 0.0
      %1122 = vmatpush.msra.mxu0 0.0
      %1123 = vmatpush.msra.mxu0 0.0
      %1124 = vmatpush.msra.mxu0 0.0
      %1125 = vmatpush.msra.mxu0 0.0
      %1126 = vmatpush.msra.mxu0 0.0
      %1127 = vmatpush.msra.mxu0 0.0
      %1128 = vmatpush.msra.mxu0 0.0
      %1129 = vmatpush.msra.mxu0 0.0
      %1130 = vmatpush.msra.mxu0 0.0
      %1131 = vmatpush.msra.mxu0 0.0
      %1132 = vmatpush.msra.mxu0 0.0
      %1133 = vmatpush.msra.mxu0 0.0
      %1134 = vmatpush.msra.mxu0 0.0
      %1135 = vmatpush.msra.mxu0 0.0
      %1136 = vmatpush.msra.mxu0 %v1119
      %1137 = vmatmul.f32.gmra.mxu0 %v1071
      %v1138 = vpop.f32.mrf.mxu0
      %v1139 = vadd.f32 0.0, %v1138
      %1140 = vmatmul.f32.gmra.mxu0 %v1074
      %v1141 = vpop.f32.mrf.mxu0
      %v1142 = vadd.f32 0.0, %v1141
      %1143 = vmatmul.f32.gmra.mxu0 %v1077
      %v1144 = vpop.f32.mrf.mxu0
      %v1145 = vadd.f32 0.0, %v1144
      %1146 = vmatmul.f32.gmra.mxu0 %v1080
      %v1147 = vpop.f32.mrf.mxu0
      %v1148 = vadd.f32 0.0, %v1147
      %1149 = vmatmul.f32.gmra.mxu0 %v1083
      %v1150 = vpop.f32.mrf.mxu0
      %v1151 = vadd.f32 0.0, %v1150
      %1152 = vmatmul.f32.gmra.mxu0 %v1086
      %v1153 = vpop.f32.mrf.mxu0
      %v1154 = vadd.f32 0.0, %v1153
      %1155 = vmatmul.f32.gmra.mxu0 %v1089
      %v1156 = vpop.f32.mrf.mxu0
      %v1157 = vadd.f32 0.0, %v1156
      %1158 = vmatmul.f32.gmra.mxu0 %v1092
      %v1159 = vpop.f32.mrf.mxu0
      %v1160 = vadd.f32 0.0, %v1159
      %1161 = vmatmul.f32.gmra.mxu0 %v1095
      %v1162 = vpop.f32.mrf.mxu0
      %v1163 = vadd.f32 0.0, %v1162
      %1164 = vmatmul.f32.gmra.mxu0 %v1098
      %v1165 = vpop.f32.mrf.mxu0
      %v1166 = vadd.f32 0.0, %v1165
      %1167 = vmatmul.f32.gmra.mxu0 %v1101
      %v1168 = vpop.f32.mrf.mxu0
      %v1169 = vadd.f32 0.0, %v1168
      %1170 = vmatmul.f32.gmra.mxu0 %v1104
      %v1171 = vpop.f32.mrf.mxu0
      %v1172 = vadd.f32 0.0, %v1171
      %1173 = vmatmul.f32.gmra.mxu0 %v1107
      %v1174 = vpop.f32.mrf.mxu0
      %v1175 = vadd.f32 0.0, %v1174
      %1176 = vmatmul.f32.gmra.mxu0 %v1110
      %v1177 = vpop.f32.mrf.mxu0
      %v1178 = vadd.f32 0.0, %v1177
      %1179 = vmatmul.f32.gmra.mxu0 %v1113
      %v1180 = vpop.f32.mrf.mxu0
      %v1181 = vadd.f32 0.0, %v1180
      %1182 = vmatmul.f32.gmra.mxu0 %v1116
      %v1183 = vpop.f32.mrf.mxu0
      %v1184 = vadd.f32 0.0, %v1183
      %1185 = vdwg.mxu0
      %v1187 = vsel %vm545, %v1051, 0
      %1189 = vmatpush.msra.mxu0 0.0
      %1190 = vmatpush.msra.mxu0 0.0
      %1191 = vmatpush.msra.mxu0 0.0
      %1192 = vmatpush.msra.mxu0 0.0
      %1193 = vmatpush.msra.mxu0 0.0
      %1194 = vmatpush.msra.mxu0 0.0
      %1195 = vmatpush.msra.mxu0 0.0
      %1196 = vmatpush.msra.mxu0 0.0
      %1197 = vmatpush.msra.mxu0 0.0
      %1198 = vmatpush.msra.mxu0 0.0
      %1199 = vmatpush.msra.mxu0 0.0
      %1200 = vmatpush.msra.mxu0 0.0
      %1201 = vmatpush.msra.mxu0 0.0
      %1202 = vmatpush.msra.mxu0 0.0
      %1203 = vmatpush.msra.mxu0 0.0
      %1204 = vmatpush.msra.mxu0 %v1187
      %1205 = vmatmul.f32.gmra.mxu0 %v498
      %v1206 = vpop.f32.mrf.mxu0
      %v1207 = vadd.f32 %v1139, %v1206
      %1208 = vmatmul.f32.gmra.mxu0 %v501
      %v1209 = vpop.f32.mrf.mxu0
      %v1210 = vadd.f32 %v1142, %v1209
      %1211 = vmatmul.f32.gmra.mxu0 %v504
      %v1212 = vpop.f32.mrf.mxu0
      %v1213 = vadd.f32 %v1145, %v1212
      %1214 = vmatmul.f32.gmra.mxu0 %v507
      %v1215 = vpop.f32.mrf.mxu0
      %v1216 = vadd.f32 %v1148, %v1215
      %1217 = vmatmul.f32.gmra.mxu0 %v510
      %v1218 = vpop.f32.mrf.mxu0
      %v1219 = vadd.f32 %v1151, %v1218
      %1220 = vmatmul.f32.gmra.mxu0 %v513
      %v1221 = vpop.f32.mrf.mxu0
      %v1222 = vadd.f32 %v1154, %v1221
      %1223 = vmatmul.f32.gmra.mxu0 %v516
      %v1224 = vpop.f32.mrf.mxu0
      %v1225 = vadd.f32 %v1157, %v1224
      %1226 = vmatmul.f32.gmra.mxu0 %v519
      %v1227 = vpop.f32.mrf.mxu0
      %v1228 = vadd.f32 %v1160, %v1227
      %1229 = vmatmul.f32.gmra.mxu0 %v522
      %v1230 = vpop.f32.mrf.mxu0
      %v1231 = vadd.f32 %v1163, %v1230
      %1232 = vmatmul.f32.gmra.mxu0 %v525
      %v1233 = vpop.f32.mrf.mxu0
      %v1234 = vadd.f32 %v1166, %v1233
      %1235 = vmatmul.f32.gmra.mxu0 %v528
      %v1236 = vpop.f32.mrf.mxu0
      %v1237 = vadd.f32 %v1169, %v1236
      %1238 = vmatmul.f32.gmra.mxu0 %v531
      %v1239 = vpop.f32.mrf.mxu0
      %v1240 = vadd.f32 %v1172, %v1239
      %1241 = vmatmul.f32.gmra.mxu0 %v534
      %v1242 = vpop.f32.mrf.mxu0
      %v1243 = vadd.f32 %v1175, %v1242
      %1244 = vmatmul.f32.gmra.mxu0 %v537
      %v1245 = vpop.f32.mrf.mxu0
      %v1246 = vadd.f32 %v1178, %v1245
      %1247 = vmatmul.f32.gmra.mxu0 %v540
      %v1248 = vpop.f32.mrf.mxu0
      %v1249 = vadd.f32 %v1181, %v1248
      %1250 = vmatmul.f32.gmra.mxu0 %v543
      %v1251 = vpop.f32.mrf.mxu0
      %v1252 = vadd.f32 %v1184, %v1251
      %1253 = vdwg.mxu0
      %s1254 = scalar_lea.vmem %s3, 24
      %v1255 = vld [vmem:[%s1254] sm:$0xf]
      %v1257 = vsel %vm545, %v1255, 0
      %1259 = vmatpush.msra.mxu0 0.0
      %1260 = vmatpush.msra.mxu0 0.0
      %1261 = vmatpush.msra.mxu0 0.0
      %1262 = vmatpush.msra.mxu0 0.0
      %1263 = vmatpush.msra.mxu0 0.0
      %1264 = vmatpush.msra.mxu0 0.0
      %1265 = vmatpush.msra.mxu0 0.0
      %1266 = vmatpush.msra.mxu0 0.0
      %1267 = vmatpush.msra.mxu0 0.0
      %1268 = vmatpush.msra.mxu0 0.0
      %1269 = vmatpush.msra.mxu0 0.0
      %1270 = vmatpush.msra.mxu0 0.0
      %1271 = vmatpush.msra.mxu0 0.0
      %1272 = vmatpush.msra.mxu0 0.0
      %1273 = vmatpush.msra.mxu0 0.0
      %1274 = vmatpush.msra.mxu0 %v1257
      %1275 = vmatmul.f32.gmra.mxu0 %v900
      %v1276 = vpop.f32.mrf.mxu0
      %v1277 = vadd.f32 0.0, %v1276
      %1278 = vmatmul.f32.gmra.mxu0 %v903
      %v1279 = vpop.f32.mrf.mxu0
      %v1280 = vadd.f32 0.0, %v1279
      %1281 = vmatmul.f32.gmra.mxu0 %v906
      %v1282 = vpop.f32.mrf.mxu0
      %v1283 = vadd.f32 0.0, %v1282
      %1284 = vmatmul.f32.gmra.mxu0 %v909
      %v1285 = vpop.f32.mrf.mxu0
      %v1286 = vadd.f32 0.0, %v1285
      %1287 = vmatmul.f32.gmra.mxu0 %v912
      %v1288 = vpop.f32.mrf.mxu0
      %v1289 = vadd.f32 0.0, %v1288
      %1290 = vmatmul.f32.gmra.mxu0 %v915
      %v1291 = vpop.f32.mrf.mxu0
      %v1292 = vadd.f32 0.0, %v1291
      %1293 = vmatmul.f32.gmra.mxu0 %v918
      %v1294 = vpop.f32.mrf.mxu0
      %v1295 = vadd.f32 0.0, %v1294
      %1296 = vmatmul.f32.gmra.mxu0 %v921
      %v1297 = vpop.f32.mrf.mxu0
      %v1298 = vadd.f32 0.0, %v1297
      %1299 = vmatmul.f32.gmra.mxu0 %v924
      %v1300 = vpop.f32.mrf.mxu0
      %v1301 = vadd.f32 0.0, %v1300
      %1302 = vmatmul.f32.gmra.mxu0 %v927
      %v1303 = vpop.f32.mrf.mxu0
      %v1304 = vadd.f32 0.0, %v1303
      %1305 = vmatmul.f32.gmra.mxu0 %v930
      %v1306 = vpop.f32.mrf.mxu0
      %v1307 = vadd.f32 0.0, %v1306
      %1308 = vmatmul.f32.gmra.mxu0 %v933
      %v1309 = vpop.f32.mrf.mxu0
      %v1310 = vadd.f32 0.0, %v1309
      %1311 = vmatmul.f32.gmra.mxu0 %v936
      %v1312 = vpop.f32.mrf.mxu0
      %v1313 = vadd.f32 0.0, %v1312
      %1314 = vmatmul.f32.gmra.mxu0 %v939
      %v1315 = vpop.f32.mrf.mxu0
      %v1316 = vadd.f32 0.0, %v1315
      %1317 = vmatmul.f32.gmra.mxu0 %v942
      %v1318 = vpop.f32.mrf.mxu0
      %v1319 = vadd.f32 0.0, %v1318
      %1320 = vmatmul.f32.gmra.mxu0 %v945
      %v1321 = vpop.f32.mrf.mxu0
      %v1322 = vadd.f32 0.0, %v1321
      %1323 = vdwg.mxu0
      %v1324 = vadd.f32 %v1207, %v1277
      %v1325 = vadd.f32 %v1210, %v1280
      %v1326 = vadd.f32 %v1213, %v1283
      %v1327 = vadd.f32 %v1216, %v1286
      %v1328 = vadd.f32 %v1219, %v1289
      %v1329 = vadd.f32 %v1222, %v1292
      %v1330 = vadd.f32 %v1225, %v1295
      %v1331 = vadd.f32 %v1228, %v1298
      %v1332 = vadd.f32 %v1231, %v1301
      %v1333 = vadd.f32 %v1234, %v1304
      %v1334 = vadd.f32 %v1237, %v1307
      %v1335 = vadd.f32 %v1240, %v1310
      %v1336 = vadd.f32 %v1243, %v1313
      %v1337 = vadd.f32 %v1246, %v1316
      %v1338 = vadd.f32 %v1249, %v1319
      %v1339 = vadd.f32 %v1252, %v1322
      %v1340 = vld [vmem:[%s730 + $0x2] sm:$0xff]
      %v1341 = vld [vmem:[%s730 + $0xa] sm:$0xff]
      %v1342 = vld [vmem:[%s730 + $0x1a] sm:$0xff]
      %v1343 = vld [vmem:[%s730 + $0x22] sm:$0xff]
      %v1344 = vld [vmem:[%s730 + $0x32] sm:$0xff]
      %v1345 = vld [vmem:[%s730 + $0x3a] sm:$0xff]
      %v1346 = vld [vmem:[%s730 + $0x4a] sm:$0xff]
      %v1347 = vld [vmem:[%s730 + $0x52] sm:$0xff]
      %v1348 = vld [vmem:[%s730 + $0x62] sm:$0xff]
      %v1349 = vld [vmem:[%s730 + $0x6a] sm:$0xff]
      %v1350 = vld [vmem:[%s730 + $0x7a] sm:$0xff]
      %v1351 = vld [vmem:[%s730 + $0x82] sm:$0xff]
      %v1352 = vld [vmem:[%s730 + $0x92] sm:$0xff]
      %v1353 = vld [vmem:[%s730 + $0x9a] sm:$0xff]
      %v1354 = vld [vmem:[%s730 + $0xaa] sm:$0xff]
      %v1355 = vld [vmem:[%s730 + $0xb2] sm:$0xff]
      %s1356 = scalar_lea.vmem %s3, 28
      %v1357 = vld [vmem:[%s1356] sm:$0xf]
      %v1359 = vsel %vm421, %v1340, 0
      %v1362 = vsel %vm421, %v1341, 0
      %v1365 = vsel %vm421, %v1342, 0
      %v1368 = vsel %vm421, %v1343, 0
      %v1371 = vsel %vm421, %v1344, 0
      %v1374 = vsel %vm421, %v1345, 0
      %v1377 = vsel %vm421, %v1346, 0
      %v1380 = vsel %vm421, %v1347, 0
      %v1383 = vsel %vm421, %v1348, 0
      %v1386 = vsel %vm421, %v1349, 0
      %v1389 = vsel %vm421, %v1350, 0
      %v1392 = vsel %vm421, %v1351, 0
      %v1395 = vsel %vm421, %v1352, 0
      %v1398 = vsel %vm421, %v1353, 0
      %v1401 = vsel %vm421, %v1354, 0
      %v1404 = vsel %vm421, %v1355, 0
      %v1407 = vsel %vm545, %v1357, 0
      %1409 = vmatpush.msra.mxu0 0.0
      %1410 = vmatpush.msra.mxu0 0.0
      %1411 = vmatpush.msra.mxu0 0.0
      %1412 = vmatpush.msra.mxu0 0.0
      %1413 = vmatpush.msra.mxu0 0.0
      %1414 = vmatpush.msra.mxu0 0.0
      %1415 = vmatpush.msra.mxu0 0.0
      %1416 = vmatpush.msra.mxu0 0.0
      %1417 = vmatpush.msra.mxu0 0.0
      %1418 = vmatpush.msra.mxu0 0.0
      %1419 = vmatpush.msra.mxu0 0.0
      %1420 = vmatpush.msra.mxu0 0.0
      %1421 = vmatpush.msra.mxu0 0.0
      %1422 = vmatpush.msra.mxu0 0.0
      %1423 = vmatpush.msra.mxu0 0.0
      %1424 = vmatpush.msra.mxu0 %v1407
      %1425 = vmatmul.f32.gmra.mxu0 %v1359
      %v1426 = vpop.f32.mrf.mxu0
      %v1427 = vadd.f32 0.0, %v1426
      %1428 = vmatmul.f32.gmra.mxu0 %v1362
      %v1429 = vpop.f32.mrf.mxu0
      %v1430 = vadd.f32 0.0, %v1429
      %1431 = vmatmul.f32.gmra.mxu0 %v1365
      %v1432 = vpop.f32.mrf.mxu0
      %v1433 = vadd.f32 0.0, %v1432
      %1434 = vmatmul.f32.gmra.mxu0 %v1368
      %v1435 = vpop.f32.mrf.mxu0
      %v1436 = vadd.f32 0.0, %v1435
      %1437 = vmatmul.f32.gmra.mxu0 %v1371
      %v1438 = vpop.f32.mrf.mxu0
      %v1439 = vadd.f32 0.0, %v1438
      %1440 = vmatmul.f32.gmra.mxu0 %v1374
      %v1441 = vpop.f32.mrf.mxu0
      %v1442 = vadd.f32 0.0, %v1441
      %1443 = vmatmul.f32.gmra.mxu0 %v1377
      %v1444 = vpop.f32.mrf.mxu0
      %v1445 = vadd.f32 0.0, %v1444
      %1446 = vmatmul.f32.gmra.mxu0 %v1380
      %v1447 = vpop.f32.mrf.mxu0
      %v1448 = vadd.f32 0.0, %v1447
      %1449 = vmatmul.f32.gmra.mxu0 %v1383
      %v1450 = vpop.f32.mrf.mxu0
      %v1451 = vadd.f32 0.0, %v1450
      %1452 = vmatmul.f32.gmra.mxu0 %v1386
      %v1453 = vpop.f32.mrf.mxu0
      %v1454 = vadd.f32 0.0, %v1453
      %1455 = vmatmul.f32.gmra.mxu0 %v1389
      %v1456 = vpop.f32.mrf.mxu0
      %v1457 = vadd.f32 0.0, %v1456
      %1458 = vmatmul.f32.gmra.mxu0 %v1392
      %v1459 = vpop.f32.mrf.mxu0
      %v1460 = vadd.f32 0.0, %v1459
      %1461 = vmatmul.f32.gmra.mxu0 %v1395
      %v1462 = vpop.f32.mrf.mxu0
      %v1463 = vadd.f32 0.0, %v1462
      %1464 = vmatmul.f32.gmra.mxu0 %v1398
      %v1465 = vpop.f32.mrf.mxu0
      %v1466 = vadd.f32 0.0, %v1465
      %1467 = vmatmul.f32.gmra.mxu0 %v1401
      %v1468 = vpop.f32.mrf.mxu0
      %v1469 = vadd.f32 0.0, %v1468
      %1470 = vmatmul.f32.gmra.mxu0 %v1404
      %v1471 = vpop.f32.mrf.mxu0
      %v1472 = vadd.f32 0.0, %v1471
      %1473 = vdwg.mxu0
      %v1474 = vadd.f32 %v1324, %v1427
      %v1475 = vadd.f32 %v1325, %v1430
      %v1476 = vadd.f32 %v1326, %v1433
      %v1477 = vadd.f32 %v1327, %v1436
      %v1478 = vadd.f32 %v1328, %v1439
      %v1479 = vadd.f32 %v1329, %v1442
      %v1480 = vadd.f32 %v1330, %v1445
      %v1481 = vadd.f32 %v1331, %v1448
      %v1482 = vadd.f32 %v1332, %v1451
      %v1483 = vadd.f32 %v1333, %v1454
      %v1484 = vadd.f32 %v1334, %v1457
      %v1485 = vadd.f32 %v1335, %v1460
      %v1486 = vadd.f32 %v1336, %v1463
      %v1487 = vadd.f32 %v1337, %v1466
      %v1488 = vadd.f32 %v1338, %v1469
      %v1489 = vadd.f32 %v1339, %v1472
      %v1490 = vadd.f32 %v1474, %v1032
      %v1491 = vadd.f32 %v1475, %v1032
      %v1492 = vadd.f32 %v1476, %v1032
      %v1493 = vadd.f32 %v1477, %v1032
      %v1494 = vadd.f32 %v1478, %v1032
      %v1495 = vadd.f32 %v1479, %v1032
      %v1496 = vadd.f32 %v1480, %v1032
      %v1497 = vadd.f32 %v1481, %v1032
      %v1498 = vadd.f32 %v1482, %v1032
      %v1499 = vadd.f32 %v1483, %v1032
      %v1500 = vadd.f32 %v1484, %v1032
      %v1501 = vadd.f32 %v1485, %v1032
      %v1502 = vadd.f32 %v1486, %v1032
      %v1503 = vadd.f32 %v1487, %v1032
      %v1504 = vadd.f32 %v1488, %v1032
      %v1505 = vadd.f32 %v1489, %v1032
      %1522 = vrot.lane.b32.xlu0 %v1490, 4
      %v1523 = vpop.permute.xlu0 %1522
      %1524 = vrot.lane.b32.xlu0 %v1491, 4
      %v1525 = vpop.permute.xlu0 %1524
      %1526 = vrot.lane.b32.xlu0 %v1492, 4
      %v1527 = vpop.permute.xlu0 %1526
      %1528 = vrot.lane.b32.xlu0 %v1493, 4
      %v1529 = vpop.permute.xlu0 %1528
      %1530 = vrot.lane.b32.xlu0 %v1494, 4
      %v1531 = vpop.permute.xlu0 %1530
      %1532 = vrot.lane.b32.xlu0 %v1495, 4
      %v1533 = vpop.permute.xlu0 %1532
      %1534 = vrot.lane.b32.xlu0 %v1496, 4
      %v1535 = vpop.permute.xlu0 %1534
      %1536 = vrot.lane.b32.xlu0 %v1497, 4
      %v1537 = vpop.permute.xlu0 %1536
      %1538 = vrot.lane.b32.xlu0 %v1498, 4
      %v1539 = vpop.permute.xlu0 %1538
      %1540 = vrot.lane.b32.xlu0 %v1499, 4
      %v1541 = vpop.permute.xlu0 %1540
      %1542 = vrot.lane.b32.xlu0 %v1500, 4
      %v1543 = vpop.permute.xlu0 %1542
      %1544 = vrot.lane.b32.xlu0 %v1501, 4
      %v1545 = vpop.permute.xlu0 %1544
      %1546 = vrot.lane.b32.xlu0 %v1502, 4
      %v1547 = vpop.permute.xlu0 %1546
      %1548 = vrot.lane.b32.xlu0 %v1503, 4
      %v1549 = vpop.permute.xlu0 %1548
      %1550 = vrot.lane.b32.xlu0 %v1504, 4
      %v1551 = vpop.permute.xlu0 %1550
      %1552 = vrot.lane.b32.xlu0 %v1505, 4
      %v1553 = vpop.permute.xlu0 %1552
      %v1570 = vsel %vm421, %v1034, %v1523
      %v1571 = vsel %vm421, %v1035, %v1525
      %v1572 = vsel %vm421, %v1036, %v1527
      %v1573 = vsel %vm421, %v1037, %v1529
      %v1574 = vsel %vm421, %v1038, %v1531
      %v1575 = vsel %vm421, %v1039, %v1533
      %v1576 = vsel %vm421, %v1040, %v1535
      %v1577 = vsel %vm421, %v1041, %v1537
      %v1578 = vsel %vm421, %v1042, %v1539
      %v1579 = vsel %vm421, %v1043, %v1541
      %v1580 = vsel %vm421, %v1044, %v1543
      %v1581 = vsel %vm421, %v1045, %v1545
      %v1582 = vsel %vm421, %v1046, %v1547
      %v1583 = vsel %vm421, %v1047, %v1549
      %v1584 = vsel %vm421, %v1048, %v1551
      %v1585 = vsel %vm421, %v1049, %v1553
      %vm1586 = vcmask 64512
      %1587 = vst.msk [vmem:[%s395] sm:$0xff] %vm1586, %v1570
      %1588 = vst.msk [vmem:[%s395 + $0x8] sm:$0xff] %vm1586, %v1571
      %1589 = vst.msk [vmem:[%s395 + $0x20] sm:$0xff] %vm1586, %v1572
      %1590 = vst.msk [vmem:[%s395 + $0x28] sm:$0xff] %vm1586, %v1573
      %1591 = vst.msk [vmem:[%s395 + $0x40] sm:$0xff] %vm1586, %v1574
      %1592 = vst.msk [vmem:[%s395 + $0x48] sm:$0xff] %vm1586, %v1575
      %1593 = vst.msk [vmem:[%s395 + $0x60] sm:$0xff] %vm1586, %v1576
      %1594 = vst.msk [vmem:[%s395 + $0x68] sm:$0xff] %vm1586, %v1577
      %1595 = vst.msk [vmem:[%s395 + $0x80] sm:$0xff] %vm1586, %v1578
      %1596 = vst.msk [vmem:[%s395 + $0x88] sm:$0xff] %vm1586, %v1579
      %1597 = vst.msk [vmem:[%s395 + $0xa0] sm:$0xff] %vm1586, %v1580
      %1598 = vst.msk [vmem:[%s395 + $0xa8] sm:$0xff] %vm1586, %v1581
      %1599 = vst.msk [vmem:[%s395 + $0xc0] sm:$0xff] %vm1586, %v1582
      %1600 = vst.msk [vmem:[%s395 + $0xc8] sm:$0xff] %vm1586, %v1583
      %1601 = vst.msk [vmem:[%s395 + $0xe0] sm:$0xff] %vm1586, %v1584
      %1602 = vst.msk [vmem:[%s395 + $0xe8] sm:$0xff] %vm1586, %v1585
      %v1603 = vld [vmem:[%s730] sm:$0xff]
      %v1604 = vld [vmem:[%s730 + $0x8] sm:$0xff]
      %v1605 = vld [vmem:[%s730 + $0x18] sm:$0xff]
      %v1606 = vld [vmem:[%s730 + $0x20] sm:$0xff]
      %v1607 = vld [vmem:[%s730 + $0x30] sm:$0xff]
      %v1608 = vld [vmem:[%s730 + $0x38] sm:$0xff]
      %v1609 = vld [vmem:[%s730 + $0x48] sm:$0xff]
      %v1610 = vld [vmem:[%s730 + $0x50] sm:$0xff]
      %v1611 = vld [vmem:[%s730 + $0x60] sm:$0xff]
      %v1612 = vld [vmem:[%s730 + $0x68] sm:$0xff]
      %v1613 = vld [vmem:[%s730 + $0x78] sm:$0xff]
      %v1614 = vld [vmem:[%s730 + $0x80] sm:$0xff]
      %v1615 = vld [vmem:[%s730 + $0x90] sm:$0xff]
      %v1616 = vld [vmem:[%s730 + $0x98] sm:$0xff]
      %v1617 = vld [vmem:[%s730 + $0xa8] sm:$0xff]
      %v1618 = vld [vmem:[%s730 + $0xb0] sm:$0xff]
      %s1619 = scalar_lea.vmem %s3, 32
      %v1620 = vld [vmem:[%s1619] sm:$0xf]
      %v1621 = vld [vmem:[%s730 + $0x1] sm:$0xff]
      %v1622 = vld [vmem:[%s730 + $0x9] sm:$0xff]
      %v1623 = vld [vmem:[%s730 + $0x19] sm:$0xff]
      %v1624 = vld [vmem:[%s730 + $0x21] sm:$0xff]
      %v1625 = vld [vmem:[%s730 + $0x31] sm:$0xff]
      %v1626 = vld [vmem:[%s730 + $0x39] sm:$0xff]
      %v1627 = vld [vmem:[%s730 + $0x49] sm:$0xff]
      %v1628 = vld [vmem:[%s730 + $0x51] sm:$0xff]
      %v1629 = vld [vmem:[%s730 + $0x61] sm:$0xff]
      %v1630 = vld [vmem:[%s730 + $0x69] sm:$0xff]
      %v1631 = vld [vmem:[%s730 + $0x79] sm:$0xff]
      %v1632 = vld [vmem:[%s730 + $0x81] sm:$0xff]
      %v1633 = vld [vmem:[%s730 + $0x91] sm:$0xff]
      %v1634 = vld [vmem:[%s730 + $0x99] sm:$0xff]
      %v1635 = vld [vmem:[%s730 + $0xa9] sm:$0xff]
      %v1636 = vld [vmem:[%s730 + $0xb1] sm:$0xff]
      %s1637 = scalar_lea.vmem %s3, 36
      %v1638 = vld [vmem:[%s1637] sm:$0xf]
      %v1640 = vsel %vm421, %v1621, 0
      %v1643 = vsel %vm421, %v1622, 0
      %v1646 = vsel %vm421, %v1623, 0
      %v1649 = vsel %vm421, %v1624, 0
      %v1652 = vsel %vm421, %v1625, 0
      %v1655 = vsel %vm421, %v1626, 0
      %v1658 = vsel %vm421, %v1627, 0
      %v1661 = vsel %vm421, %v1628, 0
      %v1664 = vsel %vm421, %v1629, 0
      %v1667 = vsel %vm421, %v1630, 0
      %v1670 = vsel %vm421, %v1631, 0
      %v1673 = vsel %vm421, %v1632, 0
      %v1676 = vsel %vm421, %v1633, 0
      %v1679 = vsel %vm421, %v1634, 0
      %v1682 = vsel %vm421, %v1635, 0
      %v1685 = vsel %vm421, %v1636, 0
      %v1688 = vsel %vm545, %v1638, 0
      %1690 = vmatpush.msra.mxu0 0.0
      %1691 = vmatpush.msra.mxu0 0.0
      %1692 = vmatpush.msra.mxu0 0.0
      %1693 = vmatpush.msra.mxu0 0.0
      %1694 = vmatpush.msra.mxu0 0.0
      %1695 = vmatpush.msra.mxu0 0.0
      %1696 = vmatpush.msra.mxu0 0.0
      %1697 = vmatpush.msra.mxu0 0.0
      %1698 = vmatpush.msra.mxu0 0.0
      %1699 = vmatpush.msra.mxu0 0.0
      %1700 = vmatpush.msra.mxu0 0.0
      %1701 = vmatpush.msra.mxu0 0.0
      %1702 = vmatpush.msra.mxu0 0.0
      %1703 = vmatpush.msra.mxu0 0.0
      %1704 = vmatpush.msra.mxu0 0.0
      %1705 = vmatpush.msra.mxu0 %v1688
      %1706 = vmatmul.f32.gmra.mxu0 %v1640
      %v1707 = vpop.f32.mrf.mxu0
      %v1708 = vadd.f32 0.0, %v1707
      %1709 = vmatmul.f32.gmra.mxu0 %v1643
      %v1710 = vpop.f32.mrf.mxu0
      %v1711 = vadd.f32 0.0, %v1710
      %1712 = vmatmul.f32.gmra.mxu0 %v1646
      %v1713 = vpop.f32.mrf.mxu0
      %v1714 = vadd.f32 0.0, %v1713
      %1715 = vmatmul.f32.gmra.mxu0 %v1649
      %v1716 = vpop.f32.mrf.mxu0
      %v1717 = vadd.f32 0.0, %v1716
      %1718 = vmatmul.f32.gmra.mxu0 %v1652
      %v1719 = vpop.f32.mrf.mxu0
      %v1720 = vadd.f32 0.0, %v1719
      %1721 = vmatmul.f32.gmra.mxu0 %v1655
      %v1722 = vpop.f32.mrf.mxu0
      %v1723 = vadd.f32 0.0, %v1722
      %1724 = vmatmul.f32.gmra.mxu0 %v1658
      %v1725 = vpop.f32.mrf.mxu0
      %v1726 = vadd.f32 0.0, %v1725
      %1727 = vmatmul.f32.gmra.mxu0 %v1661
      %v1728 = vpop.f32.mrf.mxu0
      %v1729 = vadd.f32 0.0, %v1728
      %1730 = vmatmul.f32.gmra.mxu0 %v1664
      %v1731 = vpop.f32.mrf.mxu0
      %v1732 = vadd.f32 0.0, %v1731
      %1733 = vmatmul.f32.gmra.mxu0 %v1667
      %v1734 = vpop.f32.mrf.mxu0
      %v1735 = vadd.f32 0.0, %v1734
      %1736 = vmatmul.f32.gmra.mxu0 %v1670
      %v1737 = vpop.f32.mrf.mxu0
      %v1738 = vadd.f32 0.0, %v1737
      %1739 = vmatmul.f32.gmra.mxu0 %v1673
      %v1740 = vpop.f32.mrf.mxu0
      %v1741 = vadd.f32 0.0, %v1740
      %1742 = vmatmul.f32.gmra.mxu0 %v1676
      %v1743 = vpop.f32.mrf.mxu0
      %v1744 = vadd.f32 0.0, %v1743
      %1745 = vmatmul.f32.gmra.mxu0 %v1679
      %v1746 = vpop.f32.mrf.mxu0
      %v1747 = vadd.f32 0.0, %v1746
      %1748 = vmatmul.f32.gmra.mxu0 %v1682
      %v1749 = vpop.f32.mrf.mxu0
      %v1750 = vadd.f32 0.0, %v1749
      %1751 = vmatmul.f32.gmra.mxu0 %v1685
      %v1752 = vpop.f32.mrf.mxu0
      %v1753 = vadd.f32 0.0, %v1752
      %1754 = vdwg.mxu0
      %v1756 = vsel %vm421, %v1603, 0
      %v1759 = vsel %vm421, %v1604, 0
      %v1762 = vsel %vm421, %v1605, 0
      %v1765 = vsel %vm421, %v1606, 0
      %v1768 = vsel %vm421, %v1607, 0
      %v1771 = vsel %vm421, %v1608, 0
      %v1774 = vsel %vm421, %v1609, 0
      %v1777 = vsel %vm421, %v1610, 0
      %v1780 = vsel %vm421, %v1611, 0
      %v1783 = vsel %vm421, %v1612, 0
      %v1786 = vsel %vm421, %v1613, 0
      %v1789 = vsel %vm421, %v1614, 0
      %v1792 = vsel %vm421, %v1615, 0
      %v1795 = vsel %vm421, %v1616, 0
      %v1798 = vsel %vm421, %v1617, 0
      %v1801 = vsel %vm421, %v1618, 0
      %v1804 = vsel %vm545, %v1620, 0
      %1806 = vmatpush.msra.mxu0 0.0
      %1807 = vmatpush.msra.mxu0 0.0
      %1808 = vmatpush.msra.mxu0 0.0
      %1809 = vmatpush.msra.mxu0 0.0
      %1810 = vmatpush.msra.mxu0 0.0
      %1811 = vmatpush.msra.mxu0 0.0
      %1812 = vmatpush.msra.mxu0 0.0
      %1813 = vmatpush.msra.mxu0 0.0
      %1814 = vmatpush.msra.mxu0 0.0
      %1815 = vmatpush.msra.mxu0 0.0
      %1816 = vmatpush.msra.mxu0 0.0
      %1817 = vmatpush.msra.mxu0 0.0
      %1818 = vmatpush.msra.mxu0 0.0
      %1819 = vmatpush.msra.mxu0 0.0
      %1820 = vmatpush.msra.mxu0 0.0
      %1821 = vmatpush.msra.mxu0 %v1804
      %1822 = vmatmul.f32.gmra.mxu0 %v1756
      %v1823 = vpop.f32.mrf.mxu0
      %v1824 = vadd.f32 %v1708, %v1823
      %1825 = vmatmul.f32.gmra.mxu0 %v1759
      %v1826 = vpop.f32.mrf.mxu0
      %v1827 = vadd.f32 %v1711, %v1826
      %1828 = vmatmul.f32.gmra.mxu0 %v1762
      %v1829 = vpop.f32.mrf.mxu0
      %v1830 = vadd.f32 %v1714, %v1829
      %1831 = vmatmul.f32.gmra.mxu0 %v1765
      %v1832 = vpop.f32.mrf.mxu0
      %v1833 = vadd.f32 %v1717, %v1832
      %1834 = vmatmul.f32.gmra.mxu0 %v1768
      %v1835 = vpop.f32.mrf.mxu0
      %v1836 = vadd.f32 %v1720, %v1835
      %1837 = vmatmul.f32.gmra.mxu0 %v1771
      %v1838 = vpop.f32.mrf.mxu0
      %v1839 = vadd.f32 %v1723, %v1838
      %1840 = vmatmul.f32.gmra.mxu0 %v1774
      %v1841 = vpop.f32.mrf.mxu0
      %v1842 = vadd.f32 %v1726, %v1841
      %1843 = vmatmul.f32.gmra.mxu0 %v1777
      %v1844 = vpop.f32.mrf.mxu0
      %v1845 = vadd.f32 %v1729, %v1844
      %1846 = vmatmul.f32.gmra.mxu0 %v1780
      %v1847 = vpop.f32.mrf.mxu0
      %v1848 = vadd.f32 %v1732, %v1847
      %1849 = vmatmul.f32.gmra.mxu0 %v1783
      %v1850 = vpop.f32.mrf.mxu0
      %v1851 = vadd.f32 %v1735, %v1850
      %1852 = vmatmul.f32.gmra.mxu0 %v1786
      %v1853 = vpop.f32.mrf.mxu0
      %v1854 = vadd.f32 %v1738, %v1853
      %1855 = vmatmul.f32.gmra.mxu0 %v1789
      %v1856 = vpop.f32.mrf.mxu0
      %v1857 = vadd.f32 %v1741, %v1856
      %1858 = vmatmul.f32.gmra.mxu0 %v1792
      %v1859 = vpop.f32.mrf.mxu0
      %v1860 = vadd.f32 %v1744, %v1859
      %1861 = vmatmul.f32.gmra.mxu0 %v1795
      %v1862 = vpop.f32.mrf.mxu0
      %v1863 = vadd.f32 %v1747, %v1862
      %1864 = vmatmul.f32.gmra.mxu0 %v1798
      %v1865 = vpop.f32.mrf.mxu0
      %v1866 = vadd.f32 %v1750, %v1865
      %1867 = vmatmul.f32.gmra.mxu0 %v1801
      %v1868 = vpop.f32.mrf.mxu0
      %v1869 = vadd.f32 %v1753, %v1868
      %1870 = vdwg.mxu0
      %s1871 = scalar_lea.vmem [#allocation2], 48
      %v1872 = vld [vmem:[%s1871] sm:$0xff]
      %v1873 = vld [vmem:[%s1871 + $0x8] sm:$0xff]
      %v1874 = vld [vmem:[%s1871 + $0x18] sm:$0xff]
      %v1875 = vld [vmem:[%s1871 + $0x20] sm:$0xff]
      %v1876 = vld [vmem:[%s1871 + $0x30] sm:$0xff]
      %v1877 = vld [vmem:[%s1871 + $0x38] sm:$0xff]
      %v1878 = vld [vmem:[%s1871 + $0x48] sm:$0xff]
      %v1879 = vld [vmem:[%s1871 + $0x50] sm:$0xff]
      %v1880 = vld [vmem:[%s1871 + $0x60] sm:$0xff]
      %v1881 = vld [vmem:[%s1871 + $0x68] sm:$0xff]
      %v1882 = vld [vmem:[%s1871 + $0x78] sm:$0xff]
      %v1883 = vld [vmem:[%s1871 + $0x80] sm:$0xff]
      %v1884 = vld [vmem:[%s1871 + $0x90] sm:$0xff]
      %v1885 = vld [vmem:[%s1871 + $0x98] sm:$0xff]
      %v1886 = vld [vmem:[%s1871 + $0xa8] sm:$0xff]
      %v1887 = vld [vmem:[%s1871 + $0xb0] sm:$0xff]
      %s1888 = scalar_lea.vmem %s3, 40
      %v1889 = vld [vmem:[%s1888] sm:$0xf]
      %v1891 = vsel %vm421, %v1872, 0
      %v1894 = vsel %vm421, %v1873, 0
      %v1897 = vsel %vm421, %v1874, 0
      %v1900 = vsel %vm421, %v1875, 0
      %v1903 = vsel %vm421, %v1876, 0
      %v1906 = vsel %vm421, %v1877, 0
      %v1909 = vsel %vm421, %v1878, 0
      %v1912 = vsel %vm421, %v1879, 0
      %v1915 = vsel %vm421, %v1880, 0
      %v1918 = vsel %vm421, %v1881, 0
      %v1921 = vsel %vm421, %v1882, 0
      %v1924 = vsel %vm421, %v1883, 0
      %v1927 = vsel %vm421, %v1884, 0
      %v1930 = vsel %vm421, %v1885, 0
      %v1933 = vsel %vm421, %v1886, 0
      %v1936 = vsel %vm421, %v1887, 0
      %v1939 = vsel %vm545, %v1889, 0
      %1941 = vmatpush.msra.mxu0 0.0
      %1942 = vmatpush.msra.mxu0 0.0
      %1943 = vmatpush.msra.mxu0 0.0
      %1944 = vmatpush.msra.mxu0 0.0
      %1945 = vmatpush.msra.mxu0 0.0
      %1946 = vmatpush.msra.mxu0 0.0
      %1947 = vmatpush.msra.mxu0 0.0
      %1948 = vmatpush.msra.mxu0 0.0
      %1949 = vmatpush.msra.mxu0 0.0
      %1950 = vmatpush.msra.mxu0 0.0
      %1951 = vmatpush.msra.mxu0 0.0
      %1952 = vmatpush.msra.mxu0 0.0
      %1953 = vmatpush.msra.mxu0 0.0
      %1954 = vmatpush.msra.mxu0 0.0
      %1955 = vmatpush.msra.mxu0 0.0
      %1956 = vmatpush.msra.mxu0 %v1939
      %1957 = vmatmul.f32.gmra.mxu0 %v1891
      %v1958 = vpop.f32.mrf.mxu0
      %v1959 = vadd.f32 0.0, %v1958
      %1960 = vmatmul.f32.gmra.mxu0 %v1894
      %v1961 = vpop.f32.mrf.mxu0
      %v1962 = vadd.f32 0.0, %v1961
      %1963 = vmatmul.f32.gmra.mxu0 %v1897
      %v1964 = vpop.f32.mrf.mxu0
      %v1965 = vadd.f32 0.0, %v1964
      %1966 = vmatmul.f32.gmra.mxu0 %v1900
      %v1967 = vpop.f32.mrf.mxu0
      %v1968 = vadd.f32 0.0, %v1967
      %1969 = vmatmul.f32.gmra.mxu0 %v1903
      %v1970 = vpop.f32.mrf.mxu0
      %v1971 = vadd.f32 0.0, %v1970
      %1972 = vmatmul.f32.gmra.mxu0 %v1906
      %v1973 = vpop.f32.mrf.mxu0
      %v1974 = vadd.f32 0.0, %v1973
      %1975 = vmatmul.f32.gmra.mxu0 %v1909
      %v1976 = vpop.f32.mrf.mxu0
      %v1977 = vadd.f32 0.0, %v1976
      %1978 = vmatmul.f32.gmra.mxu0 %v1912
      %v1979 = vpop.f32.mrf.mxu0
      %v1980 = vadd.f32 0.0, %v1979
      %1981 = vmatmul.f32.gmra.mxu0 %v1915
      %v1982 = vpop.f32.mrf.mxu0
      %v1983 = vadd.f32 0.0, %v1982
      %1984 = vmatmul.f32.gmra.mxu0 %v1918
      %v1985 = vpop.f32.mrf.mxu0
      %v1986 = vadd.f32 0.0, %v1985
      %1987 = vmatmul.f32.gmra.mxu0 %v1921
      %v1988 = vpop.f32.mrf.mxu0
      %v1989 = vadd.f32 0.0, %v1988
      %1990 = vmatmul.f32.gmra.mxu0 %v1924
      %v1991 = vpop.f32.mrf.mxu0
      %v1992 = vadd.f32 0.0, %v1991
      %1993 = vmatmul.f32.gmra.mxu0 %v1927
      %v1994 = vpop.f32.mrf.mxu0
      %v1995 = vadd.f32 0.0, %v1994
      %1996 = vmatmul.f32.gmra.mxu0 %v1930
      %v1997 = vpop.f32.mrf.mxu0
      %v1998 = vadd.f32 0.0, %v1997
      %1999 = vmatmul.f32.gmra.mxu0 %v1933
      %v2000 = vpop.f32.mrf.mxu0
      %v2001 = vadd.f32 0.0, %v2000
      %2002 = vmatmul.f32.gmra.mxu0 %v1936
      %v2003 = vpop.f32.mrf.mxu0
      %v2004 = vadd.f32 0.0, %v2003
      %2005 = vdwg.mxu0
      %v2006 = vadd.f32 %v1824, %v1959
      %v2007 = vadd.f32 %v1827, %v1962
      %v2008 = vadd.f32 %v1830, %v1965
      %v2009 = vadd.f32 %v1833, %v1968
      %v2010 = vadd.f32 %v1836, %v1971
      %v2011 = vadd.f32 %v1839, %v1974
      %v2012 = vadd.f32 %v1842, %v1977
      %v2013 = vadd.f32 %v1845, %v1980
      %v2014 = vadd.f32 %v1848, %v1983
      %v2015 = vadd.f32 %v1851, %v1986
      %v2016 = vadd.f32 %v1854, %v1989
      %v2017 = vadd.f32 %v1857, %v1992
      %v2018 = vadd.f32 %v1860, %v1995
      %v2019 = vadd.f32 %v1863, %v1998
      %v2020 = vadd.f32 %v1866, %v2001
      %v2021 = vadd.f32 %v1869, %v2004
      %v2022 = vld [vmem:[%s1871 + $0x1] sm:$0xff]
      %v2023 = vld [vmem:[%s1871 + $0x9] sm:$0xff]
      %v2024 = vld [vmem:[%s1871 + $0x19] sm:$0xff]
      %v2025 = vld [vmem:[%s1871 + $0x21] sm:$0xff]
      %v2026 = vld [vmem:[%s1871 + $0x31] sm:$0xff]
      %v2027 = vld [vmem:[%s1871 + $0x39] sm:$0xff]
      %v2028 = vld [vmem:[%s1871 + $0x49] sm:$0xff]
      %v2029 = vld [vmem:[%s1871 + $0x51] sm:$0xff]
      %v2030 = vld [vmem:[%s1871 + $0x61] sm:$0xff]
      %v2031 = vld [vmem:[%s1871 + $0x69] sm:$0xff]
      %v2032 = vld [vmem:[%s1871 + $0x79] sm:$0xff]
      %v2033 = vld [vmem:[%s1871 + $0x81] sm:$0xff]
      %v2034 = vld [vmem:[%s1871 + $0x91] sm:$0xff]
      %v2035 = vld [vmem:[%s1871 + $0x99] sm:$0xff]
      %v2036 = vld [vmem:[%s1871 + $0xa9] sm:$0xff]
      %v2037 = vld [vmem:[%s1871 + $0xb1] sm:$0xff]
      %s2038 = scalar_lea.vmem %s3, 44
      %v2039 = vld [vmem:[%s2038] sm:$0xf]
      %v2041 = vsel %vm421, %v2022, 0
      %v2044 = vsel %vm421, %v2023, 0
      %v2047 = vsel %vm421, %v2024, 0
      %v2050 = vsel %vm421, %v2025, 0
      %v2053 = vsel %vm421, %v2026, 0
      %v2056 = vsel %vm421, %v2027, 0
      %v2059 = vsel %vm421, %v2028, 0
      %v2062 = vsel %vm421, %v2029, 0
      %v2065 = vsel %vm421, %v2030, 0
      %v2068 = vsel %vm421, %v2031, 0
      %v2071 = vsel %vm421, %v2032, 0
      %v2074 = vsel %vm421, %v2033, 0
      %v2077 = vsel %vm421, %v2034, 0
      %v2080 = vsel %vm421, %v2035, 0
      %v2083 = vsel %vm421, %v2036, 0
      %v2086 = vsel %vm421, %v2037, 0
      %v2089 = vsel %vm545, %v2039, 0
      %2091 = vmatpush.msra.mxu0 0.0
      %2092 = vmatpush.msra.mxu0 0.0
      %2093 = vmatpush.msra.mxu0 0.0
      %2094 = vmatpush.msra.mxu0 0.0
      %2095 = vmatpush.msra.mxu0 0.0
      %2096 = vmatpush.msra.mxu0 0.0
      %2097 = vmatpush.msra.mxu0 0.0
      %2098 = vmatpush.msra.mxu0 0.0
      %2099 = vmatpush.msra.mxu0 0.0
      %2100 = vmatpush.msra.mxu0 0.0
      %2101 = vmatpush.msra.mxu0 0.0
      %2102 = vmatpush.msra.mxu0 0.0
      %2103 = vmatpush.msra.mxu0 0.0
      %2104 = vmatpush.msra.mxu0 0.0
      %2105 = vmatpush.msra.mxu0 0.0
      %2106 = vmatpush.msra.mxu0 %v2089
      %2107 = vmatmul.f32.gmra.mxu0 %v2041
      %v2108 = vpop.f32.mrf.mxu0
      %v2109 = vadd.f32 0.0, %v2108
      %2110 = vmatmul.f32.gmra.mxu0 %v2044
      %v2111 = vpop.f32.mrf.mxu0
      %v2112 = vadd.f32 0.0, %v2111
      %2113 = vmatmul.f32.gmra.mxu0 %v2047
      %v2114 = vpop.f32.mrf.mxu0
      %v2115 = vadd.f32 0.0, %v2114
      %2116 = vmatmul.f32.gmra.mxu0 %v2050
      %v2117 = vpop.f32.mrf.mxu0
      %v2118 = vadd.f32 0.0, %v2117
      %2119 = vmatmul.f32.gmra.mxu0 %v2053
      %v2120 = vpop.f32.mrf.mxu0
      %v2121 = vadd.f32 0.0, %v2120
      %2122 = vmatmul.f32.gmra.mxu0 %v2056
      %v2123 = vpop.f32.mrf.mxu0
      %v2124 = vadd.f32 0.0, %v2123
      %2125 = vmatmul.f32.gmra.mxu0 %v2059
      %v2126 = vpop.f32.mrf.mxu0
      %v2127 = vadd.f32 0.0, %v2126
      %2128 = vmatmul.f32.gmra.mxu0 %v2062
      %v2129 = vpop.f32.mrf.mxu0
      %v2130 = vadd.f32 0.0, %v2129
      %2131 = vmatmul.f32.gmra.mxu0 %v2065
      %v2132 = vpop.f32.mrf.mxu0
      %v2133 = vadd.f32 0.0, %v2132
      %2134 = vmatmul.f32.gmra.mxu0 %v2068
      %v2135 = vpop.f32.mrf.mxu0
      %v2136 = vadd.f32 0.0, %v2135
      %2137 = vmatmul.f32.gmra.mxu0 %v2071
      %v2138 = vpop.f32.mrf.mxu0
      %v2139 = vadd.f32 0.0, %v2138
      %2140 = vmatmul.f32.gmra.mxu0 %v2074
      %v2141 = vpop.f32.mrf.mxu0
      %v2142 = vadd.f32 0.0, %v2141
      %2143 = vmatmul.f32.gmra.mxu0 %v2077
      %v2144 = vpop.f32.mrf.mxu0
      %v2145 = vadd.f32 0.0, %v2144
      %2146 = vmatmul.f32.gmra.mxu0 %v2080
      %v2147 = vpop.f32.mrf.mxu0
      %v2148 = vadd.f32 0.0, %v2147
      %2149 = vmatmul.f32.gmra.mxu0 %v2083
      %v2150 = vpop.f32.mrf.mxu0
      %v2151 = vadd.f32 0.0, %v2150
      %2152 = vmatmul.f32.gmra.mxu0 %v2086
      %v2153 = vpop.f32.mrf.mxu0
      %v2154 = vadd.f32 0.0, %v2153
      %2155 = vdwg.mxu0
      %v2156 = vadd.f32 %v2006, %v2109
      %v2157 = vadd.f32 %v2007, %v2112
      %v2158 = vadd.f32 %v2008, %v2115
      %v2159 = vadd.f32 %v2009, %v2118
      %v2160 = vadd.f32 %v2010, %v2121
      %v2161 = vadd.f32 %v2011, %v2124
      %v2162 = vadd.f32 %v2012, %v2127
      %v2163 = vadd.f32 %v2013, %v2130
      %v2164 = vadd.f32 %v2014, %v2133
      %v2165 = vadd.f32 %v2015, %v2136
      %v2166 = vadd.f32 %v2016, %v2139
      %v2167 = vadd.f32 %v2017, %v2142
      %v2168 = vadd.f32 %v2018, %v2145
      %v2169 = vadd.f32 %v2019, %v2148
      %v2170 = vadd.f32 %v2020, %v2151
      %v2171 = vadd.f32 %v2021, %v2154
      %v2172 = vadd.f32 %v2156, %v1032
      %v2173 = vadd.f32 %v2157, %v1032
      %v2174 = vadd.f32 %v2158, %v1032
      %v2175 = vadd.f32 %v2159, %v1032
      %v2176 = vadd.f32 %v2160, %v1032
      %v2177 = vadd.f32 %v2161, %v1032
      %v2178 = vadd.f32 %v2162, %v1032
      %v2179 = vadd.f32 %v2163, %v1032
      %v2180 = vadd.f32 %v2164, %v1032
      %v2181 = vadd.f32 %v2165, %v1032
      %v2182 = vadd.f32 %v2166, %v1032
      %v2183 = vadd.f32 %v2167, %v1032
      %v2184 = vadd.f32 %v2168, %v1032
      %v2185 = vadd.f32 %v2169, %v1032
      %v2186 = vadd.f32 %v2170, %v1032
      %v2187 = vadd.f32 %v2171, %v1032
      %s2188 = scalar_lea.vmem %s3, 48
      %v2189 = vld [vmem:[%s2188] sm:$0xf]
      %v2190 = vld [vmem:[%s730 + $0x2] sm:$0xff]
      %v2191 = vld [vmem:[%s730 + $0xa] sm:$0xff]
      %v2192 = vld [vmem:[%s730 + $0x1a] sm:$0xff]
      %v2193 = vld [vmem:[%s730 + $0x22] sm:$0xff]
      %v2194 = vld [vmem:[%s730 + $0x32] sm:$0xff]
      %v2195 = vld [vmem:[%s730 + $0x3a] sm:$0xff]
      %v2196 = vld [vmem:[%s730 + $0x4a] sm:$0xff]
      %v2197 = vld [vmem:[%s730 + $0x52] sm:$0xff]
      %v2198 = vld [vmem:[%s730 + $0x62] sm:$0xff]
      %v2199 = vld [vmem:[%s730 + $0x6a] sm:$0xff]
      %v2200 = vld [vmem:[%s730 + $0x7a] sm:$0xff]
      %v2201 = vld [vmem:[%s730 + $0x82] sm:$0xff]
      %v2202 = vld [vmem:[%s730 + $0x92] sm:$0xff]
      %v2203 = vld [vmem:[%s730 + $0x9a] sm:$0xff]
      %v2204 = vld [vmem:[%s730 + $0xaa] sm:$0xff]
      %v2205 = vld [vmem:[%s730 + $0xb2] sm:$0xff]
      %s2206 = scalar_lea.vmem %s3, 52
      %v2207 = vld [vmem:[%s2206] sm:$0xf]
      %v2209 = vsel %vm421, %v2190, 0
      %v2212 = vsel %vm421, %v2191, 0
      %v2215 = vsel %vm421, %v2192, 0
      %v2218 = vsel %vm421, %v2193, 0
      %v2221 = vsel %vm421, %v2194, 0
      %v2224 = vsel %vm421, %v2195, 0
      %v2227 = vsel %vm421, %v2196, 0
      %v2230 = vsel %vm421, %v2197, 0
      %v2233 = vsel %vm421, %v2198, 0
      %v2236 = vsel %vm421, %v2199, 0
      %v2239 = vsel %vm421, %v2200, 0
      %v2242 = vsel %vm421, %v2201, 0
      %v2245 = vsel %vm421, %v2202, 0
      %v2248 = vsel %vm421, %v2203, 0
      %v2251 = vsel %vm421, %v2204, 0
      %v2254 = vsel %vm421, %v2205, 0
      %v2257 = vsel %vm545, %v2207, 0
      %2259 = vmatpush.msra.mxu0 0.0
      %2260 = vmatpush.msra.mxu0 0.0
      %2261 = vmatpush.msra.mxu0 0.0
      %2262 = vmatpush.msra.mxu0 0.0
      %2263 = vmatpush.msra.mxu0 0.0
      %2264 = vmatpush.msra.mxu0 0.0
      %2265 = vmatpush.msra.mxu0 0.0
      %2266 = vmatpush.msra.mxu0 0.0
      %2267 = vmatpush.msra.mxu0 0.0
      %2268 = vmatpush.msra.mxu0 0.0
      %2269 = vmatpush.msra.mxu0 0.0
      %2270 = vmatpush.msra.mxu0 0.0
      %2271 = vmatpush.msra.mxu0 0.0
      %2272 = vmatpush.msra.mxu0 0.0
      %2273 = vmatpush.msra.mxu0 0.0
      %2274 = vmatpush.msra.mxu0 %v2257
      %2275 = vmatmul.f32.gmra.mxu0 %v2209
      %v2276 = vpop.f32.mrf.mxu0
      %v2277 = vadd.f32 0.0, %v2276
      %2278 = vmatmul.f32.gmra.mxu0 %v2212
      %v2279 = vpop.f32.mrf.mxu0
      %v2280 = vadd.f32 0.0, %v2279
      %2281 = vmatmul.f32.gmra.mxu0 %v2215
      %v2282 = vpop.f32.mrf.mxu0
      %v2283 = vadd.f32 0.0, %v2282
      %2284 = vmatmul.f32.gmra.mxu0 %v2218
      %v2285 = vpop.f32.mrf.mxu0
      %v2286 = vadd.f32 0.0, %v2285
      %2287 = vmatmul.f32.gmra.mxu0 %v2221
      %v2288 = vpop.f32.mrf.mxu0
      %v2289 = vadd.f32 0.0, %v2288
      %2290 = vmatmul.f32.gmra.mxu0 %v2224
      %v2291 = vpop.f32.mrf.mxu0
      %v2292 = vadd.f32 0.0, %v2291
      %2293 = vmatmul.f32.gmra.mxu0 %v2227
      %v2294 = vpop.f32.mrf.mxu0
      %v2295 = vadd.f32 0.0, %v2294
      %2296 = vmatmul.f32.gmra.mxu0 %v2230
      %v2297 = vpop.f32.mrf.mxu0
      %v2298 = vadd.f32 0.0, %v2297
      %2299 = vmatmul.f32.gmra.mxu0 %v2233
      %v2300 = vpop.f32.mrf.mxu0
      %v2301 = vadd.f32 0.0, %v2300
      %2302 = vmatmul.f32.gmra.mxu0 %v2236
      %v2303 = vpop.f32.mrf.mxu0
      %v2304 = vadd.f32 0.0, %v2303
      %2305 = vmatmul.f32.gmra.mxu0 %v2239
      %v2306 = vpop.f32.mrf.mxu0
      %v2307 = vadd.f32 0.0, %v2306
      %2308 = vmatmul.f32.gmra.mxu0 %v2242
      %v2309 = vpop.f32.mrf.mxu0
      %v2310 = vadd.f32 0.0, %v2309
      %2311 = vmatmul.f32.gmra.mxu0 %v2245
      %v2312 = vpop.f32.mrf.mxu0
      %v2313 = vadd.f32 0.0, %v2312
      %2314 = vmatmul.f32.gmra.mxu0 %v2248
      %v2315 = vpop.f32.mrf.mxu0
      %v2316 = vadd.f32 0.0, %v2315
      %2317 = vmatmul.f32.gmra.mxu0 %v2251
      %v2318 = vpop.f32.mrf.mxu0
      %v2319 = vadd.f32 0.0, %v2318
      %2320 = vmatmul.f32.gmra.mxu0 %v2254
      %v2321 = vpop.f32.mrf.mxu0
      %v2322 = vadd.f32 0.0, %v2321
      %2323 = vdwg.mxu0
      %v2325 = vsel %vm545, %v2189, 0
      %2327 = vmatpush.msra.mxu0 0.0
      %2328 = vmatpush.msra.mxu0 0.0
      %2329 = vmatpush.msra.mxu0 0.0
      %2330 = vmatpush.msra.mxu0 0.0
      %2331 = vmatpush.msra.mxu0 0.0
      %2332 = vmatpush.msra.mxu0 0.0
      %2333 = vmatpush.msra.mxu0 0.0
      %2334 = vmatpush.msra.mxu0 0.0
      %2335 = vmatpush.msra.mxu0 0.0
      %2336 = vmatpush.msra.mxu0 0.0
      %2337 = vmatpush.msra.mxu0 0.0
      %2338 = vmatpush.msra.mxu0 0.0
      %2339 = vmatpush.msra.mxu0 0.0
      %2340 = vmatpush.msra.mxu0 0.0
      %2341 = vmatpush.msra.mxu0 0.0
      %2342 = vmatpush.msra.mxu0 %v2325
      %2343 = vmatmul.f32.gmra.mxu0 %v1640
      %v2344 = vpop.f32.mrf.mxu0
      %v2345 = vadd.f32 %v2277, %v2344
      %2346 = vmatmul.f32.gmra.mxu0 %v1643
      %v2347 = vpop.f32.mrf.mxu0
      %v2348 = vadd.f32 %v2280, %v2347
      %2349 = vmatmul.f32.gmra.mxu0 %v1646
      %v2350 = vpop.f32.mrf.mxu0
      %v2351 = vadd.f32 %v2283, %v2350
      %2352 = vmatmul.f32.gmra.mxu0 %v1649
      %v2353 = vpop.f32.mrf.mxu0
      %v2354 = vadd.f32 %v2286, %v2353
      %2355 = vmatmul.f32.gmra.mxu0 %v1652
      %v2356 = vpop.f32.mrf.mxu0
      %v2357 = vadd.f32 %v2289, %v2356
      %2358 = vmatmul.f32.gmra.mxu0 %v1655
      %v2359 = vpop.f32.mrf.mxu0
      %v2360 = vadd.f32 %v2292, %v2359
      %2361 = vmatmul.f32.gmra.mxu0 %v1658
      %v2362 = vpop.f32.mrf.mxu0
      %v2363 = vadd.f32 %v2295, %v2362
      %2364 = vmatmul.f32.gmra.mxu0 %v1661
      %v2365 = vpop.f32.mrf.mxu0
      %v2366 = vadd.f32 %v2298, %v2365
      %2367 = vmatmul.f32.gmra.mxu0 %v1664
      %v2368 = vpop.f32.mrf.mxu0
      %v2369 = vadd.f32 %v2301, %v2368
      %2370 = vmatmul.f32.gmra.mxu0 %v1667
      %v2371 = vpop.f32.mrf.mxu0
      %v2372 = vadd.f32 %v2304, %v2371
      %2373 = vmatmul.f32.gmra.mxu0 %v1670
      %v2374 = vpop.f32.mrf.mxu0
      %v2375 = vadd.f32 %v2307, %v2374
      %2376 = vmatmul.f32.gmra.mxu0 %v1673
      %v2377 = vpop.f32.mrf.mxu0
      %v2378 = vadd.f32 %v2310, %v2377
      %2379 = vmatmul.f32.gmra.mxu0 %v1676
      %v2380 = vpop.f32.mrf.mxu0
      %v2381 = vadd.f32 %v2313, %v2380
      %2382 = vmatmul.f32.gmra.mxu0 %v1679
      %v2383 = vpop.f32.mrf.mxu0
      %v2384 = vadd.f32 %v2316, %v2383
      %2385 = vmatmul.f32.gmra.mxu0 %v1682
      %v2386 = vpop.f32.mrf.mxu0
      %v2387 = vadd.f32 %v2319, %v2386
      %2388 = vmatmul.f32.gmra.mxu0 %v1685
      %v2389 = vpop.f32.mrf.mxu0
      %v2390 = vadd.f32 %v2322, %v2389
      %2391 = vdwg.mxu0
      %s2392 = scalar_lea.vmem %s3, 56
      %v2393 = vld [vmem:[%s2392] sm:$0xf]
      %v2395 = vsel %vm545, %v2393, 0
      %2397 = vmatpush.msra.mxu0 0.0
      %2398 = vmatpush.msra.mxu0 0.0
      %2399 = vmatpush.msra.mxu0 0.0
      %2400 = vmatpush.msra.mxu0 0.0
      %2401 = vmatpush.msra.mxu0 0.0
      %2402 = vmatpush.msra.mxu0 0.0
      %2403 = vmatpush.msra.mxu0 0.0
      %2404 = vmatpush.msra.mxu0 0.0
      %2405 = vmatpush.msra.mxu0 0.0
      %2406 = vmatpush.msra.mxu0 0.0
      %2407 = vmatpush.msra.mxu0 0.0
      %2408 = vmatpush.msra.mxu0 0.0
      %2409 = vmatpush.msra.mxu0 0.0
      %2410 = vmatpush.msra.mxu0 0.0
      %2411 = vmatpush.msra.mxu0 0.0
      %2412 = vmatpush.msra.mxu0 %v2395
      %2413 = vmatmul.f32.gmra.mxu0 %v2041
      %v2414 = vpop.f32.mrf.mxu0
      %v2415 = vadd.f32 0.0, %v2414
      %2416 = vmatmul.f32.gmra.mxu0 %v2044
      %v2417 = vpop.f32.mrf.mxu0
      %v2418 = vadd.f32 0.0, %v2417
      %2419 = vmatmul.f32.gmra.mxu0 %v2047
      %v2420 = vpop.f32.mrf.mxu0
      %v2421 = vadd.f32 0.0, %v2420
      %2422 = vmatmul.f32.gmra.mxu0 %v2050
      %v2423 = vpop.f32.mrf.mxu0
      %v2424 = vadd.f32 0.0, %v2423
      %2425 = vmatmul.f32.gmra.mxu0 %v2053
      %v2426 = vpop.f32.mrf.mxu0
      %v2427 = vadd.f32 0.0, %v2426
      %2428 = vmatmul.f32.gmra.mxu0 %v2056
      %v2429 = vpop.f32.mrf.mxu0
      %v2430 = vadd.f32 0.0, %v2429
      %2431 = vmatmul.f32.gmra.mxu0 %v2059
      %v2432 = vpop.f32.mrf.mxu0
      %v2433 = vadd.f32 0.0, %v2432
      %2434 = vmatmul.f32.gmra.mxu0 %v2062
      %v2435 = vpop.f32.mrf.mxu0
      %v2436 = vadd.f32 0.0, %v2435
      %2437 = vmatmul.f32.gmra.mxu0 %v2065
      %v2438 = vpop.f32.mrf.mxu0
      %v2439 = vadd.f32 0.0, %v2438
      %2440 = vmatmul.f32.gmra.mxu0 %v2068
      %v2441 = vpop.f32.mrf.mxu0
      %v2442 = vadd.f32 0.0, %v2441
      %2443 = vmatmul.f32.gmra.mxu0 %v2071
      %v2444 = vpop.f32.mrf.mxu0
      %v2445 = vadd.f32 0.0, %v2444
      %2446 = vmatmul.f32.gmra.mxu0 %v2074
      %v2447 = vpop.f32.mrf.mxu0
      %v2448 = vadd.f32 0.0, %v2447
      %2449 = vmatmul.f32.gmra.mxu0 %v2077
      %v2450 = vpop.f32.mrf.mxu0
      %v2451 = vadd.f32 0.0, %v2450
      %2452 = vmatmul.f32.gmra.mxu0 %v2080
      %v2453 = vpop.f32.mrf.mxu0
      %v2454 = vadd.f32 0.0, %v2453
      %2455 = vmatmul.f32.gmra.mxu0 %v2083
      %v2456 = vpop.f32.mrf.mxu0
      %v2457 = vadd.f32 0.0, %v2456
      %2458 = vmatmul.f32.gmra.mxu0 %v2086
      %v2459 = vpop.f32.mrf.mxu0
      %v2460 = vadd.f32 0.0, %v2459
      %2461 = vdwg.mxu0
      %v2462 = vadd.f32 %v2345, %v2415
      %v2463 = vadd.f32 %v2348, %v2418
      %v2464 = vadd.f32 %v2351, %v2421
      %v2465 = vadd.f32 %v2354, %v2424
      %v2466 = vadd.f32 %v2357, %v2427
      %v2467 = vadd.f32 %v2360, %v2430
      %v2468 = vadd.f32 %v2363, %v2433
      %v2469 = vadd.f32 %v2366, %v2436
      %v2470 = vadd.f32 %v2369, %v2439
      %v2471 = vadd.f32 %v2372, %v2442
      %v2472 = vadd.f32 %v2375, %v2445
      %v2473 = vadd.f32 %v2378, %v2448
      %v2474 = vadd.f32 %v2381, %v2451
      %v2475 = vadd.f32 %v2384, %v2454
      %v2476 = vadd.f32 %v2387, %v2457
      %v2477 = vadd.f32 %v2390, %v2460
      %v2478 = vld [vmem:[%s1871 + $0x2] sm:$0xff]
      %v2479 = vld [vmem:[%s1871 + $0xa] sm:$0xff]
      %v2480 = vld [vmem:[%s1871 + $0x1a] sm:$0xff]
      %v2481 = vld [vmem:[%s1871 + $0x22] sm:$0xff]
      %v2482 = vld [vmem:[%s1871 + $0x32] sm:$0xff]
      %v2483 = vld [vmem:[%s1871 + $0x3a] sm:$0xff]
      %v2484 = vld [vmem:[%s1871 + $0x4a] sm:$0xff]
      %v2485 = vld [vmem:[%s1871 + $0x52] sm:$0xff]
      %v2486 = vld [vmem:[%s1871 + $0x62] sm:$0xff]
      %v2487 = vld [vmem:[%s1871 + $0x6a] sm:$0xff]
      %v2488 = vld [vmem:[%s1871 + $0x7a] sm:$0xff]
      %v2489 = vld [vmem:[%s1871 + $0x82] sm:$0xff]
      %v2490 = vld [vmem:[%s1871 + $0x92] sm:$0xff]
      %v2491 = vld [vmem:[%s1871 + $0x9a] sm:$0xff]
      %v2492 = vld [vmem:[%s1871 + $0xaa] sm:$0xff]
      %v2493 = vld [vmem:[%s1871 + $0xb2] sm:$0xff]
      %s2494 = scalar_lea.vmem %s3, 60
      %v2495 = vld [vmem:[%s2494] sm:$0xf]
      %v2497 = vsel %vm421, %v2478, 0
      %v2500 = vsel %vm421, %v2479, 0
      %v2503 = vsel %vm421, %v2480, 0
      %v2506 = vsel %vm421, %v2481, 0
      %v2509 = vsel %vm421, %v2482, 0
      %v2512 = vsel %vm421, %v2483, 0
      %v2515 = vsel %vm421, %v2484, 0
      %v2518 = vsel %vm421, %v2485, 0
      %v2521 = vsel %vm421, %v2486, 0
      %v2524 = vsel %vm421, %v2487, 0
      %v2527 = vsel %vm421, %v2488, 0
      %v2530 = vsel %vm421, %v2489, 0
      %v2533 = vsel %vm421, %v2490, 0
      %v2536 = vsel %vm421, %v2491, 0
      %v2539 = vsel %vm421, %v2492, 0
      %v2542 = vsel %vm421, %v2493, 0
      %v2545 = vsel %vm545, %v2495, 0
      %2547 = vmatpush.msra.mxu0 0.0
      %2548 = vmatpush.msra.mxu0 0.0
      %2549 = vmatpush.msra.mxu0 0.0
      %2550 = vmatpush.msra.mxu0 0.0
      %2551 = vmatpush.msra.mxu0 0.0
      %2552 = vmatpush.msra.mxu0 0.0
      %2553 = vmatpush.msra.mxu0 0.0
      %2554 = vmatpush.msra.mxu0 0.0
      %2555 = vmatpush.msra.mxu0 0.0
      %2556 = vmatpush.msra.mxu0 0.0
      %2557 = vmatpush.msra.mxu0 0.0
      %2558 = vmatpush.msra.mxu0 0.0
      %2559 = vmatpush.msra.mxu0 0.0
      %2560 = vmatpush.msra.mxu0 0.0
      %2561 = vmatpush.msra.mxu0 0.0
      %2562 = vmatpush.msra.mxu0 %v2545
      %2563 = vmatmul.f32.gmra.mxu0 %v2497
      %v2564 = vpop.f32.mrf.mxu0
      %v2565 = vadd.f32 0.0, %v2564
      %2566 = vmatmul.f32.gmra.mxu0 %v2500
      %v2567 = vpop.f32.mrf.mxu0
      %v2568 = vadd.f32 0.0, %v2567
      %2569 = vmatmul.f32.gmra.mxu0 %v2503
      %v2570 = vpop.f32.mrf.mxu0
      %v2571 = vadd.f32 0.0, %v2570
      %2572 = vmatmul.f32.gmra.mxu0 %v2506
      %v2573 = vpop.f32.mrf.mxu0
      %v2574 = vadd.f32 0.0, %v2573
      %2575 = vmatmul.f32.gmra.mxu0 %v2509
      %v2576 = vpop.f32.mrf.mxu0
      %v2577 = vadd.f32 0.0, %v2576
      %2578 = vmatmul.f32.gmra.mxu0 %v2512
      %v2579 = vpop.f32.mrf.mxu0
      %v2580 = vadd.f32 0.0, %v2579
      %2581 = vmatmul.f32.gmra.mxu0 %v2515
      %v2582 = vpop.f32.mrf.mxu0
      %v2583 = vadd.f32 0.0, %v2582
      %2584 = vmatmul.f32.gmra.mxu0 %v2518
      %v2585 = vpop.f32.mrf.mxu0
      %v2586 = vadd.f32 0.0, %v2585
      %2587 = vmatmul.f32.gmra.mxu0 %v2521
      %v2588 = vpop.f32.mrf.mxu0
      %v2589 = vadd.f32 0.0, %v2588
      %2590 = vmatmul.f32.gmra.mxu0 %v2524
      %v2591 = vpop.f32.mrf.mxu0
      %v2592 = vadd.f32 0.0, %v2591
      %2593 = vmatmul.f32.gmra.mxu0 %v2527
      %v2594 = vpop.f32.mrf.mxu0
      %v2595 = vadd.f32 0.0, %v2594
      %2596 = vmatmul.f32.gmra.mxu0 %v2530
      %v2597 = vpop.f32.mrf.mxu0
      %v2598 = vadd.f32 0.0, %v2597
      %2599 = vmatmul.f32.gmra.mxu0 %v2533
      %v2600 = vpop.f32.mrf.mxu0
      %v2601 = vadd.f32 0.0, %v2600
      %2602 = vmatmul.f32.gmra.mxu0 %v2536
      %v2603 = vpop.f32.mrf.mxu0
      %v2604 = vadd.f32 0.0, %v2603
      %2605 = vmatmul.f32.gmra.mxu0 %v2539
      %v2606 = vpop.f32.mrf.mxu0
      %v2607 = vadd.f32 0.0, %v2606
      %2608 = vmatmul.f32.gmra.mxu0 %v2542
      %v2609 = vpop.f32.mrf.mxu0
      %v2610 = vadd.f32 0.0, %v2609
      %2611 = vdwg.mxu0
      %v2612 = vadd.f32 %v2462, %v2565
      %v2613 = vadd.f32 %v2463, %v2568
      %v2614 = vadd.f32 %v2464, %v2571
      %v2615 = vadd.f32 %v2465, %v2574
      %v2616 = vadd.f32 %v2466, %v2577
      %v2617 = vadd.f32 %v2467, %v2580
      %v2618 = vadd.f32 %v2468, %v2583
      %v2619 = vadd.f32 %v2469, %v2586
      %v2620 = vadd.f32 %v2470, %v2589
      %v2621 = vadd.f32 %v2471, %v2592
      %v2622 = vadd.f32 %v2472, %v2595
      %v2623 = vadd.f32 %v2473, %v2598
      %v2624 = vadd.f32 %v2474, %v2601
      %v2625 = vadd.f32 %v2475, %v2604
      %v2626 = vadd.f32 %v2476, %v2607
      %v2627 = vadd.f32 %v2477, %v2610
      %v2628 = vadd.f32 %v2612, %v1032
      %v2629 = vadd.f32 %v2613, %v1032
      %v2630 = vadd.f32 %v2614, %v1032
      %v2631 = vadd.f32 %v2615, %v1032
      %v2632 = vadd.f32 %v2616, %v1032
      %v2633 = vadd.f32 %v2617, %v1032
      %v2634 = vadd.f32 %v2618, %v1032
      %v2635 = vadd.f32 %v2619, %v1032
      %v2636 = vadd.f32 %v2620, %v1032
      %v2637 = vadd.f32 %v2621, %v1032
      %v2638 = vadd.f32 %v2622, %v1032
      %v2639 = vadd.f32 %v2623, %v1032
      %v2640 = vadd.f32 %v2624, %v1032
      %v2641 = vadd.f32 %v2625, %v1032
      %v2642 = vadd.f32 %v2626, %v1032
      %v2643 = vadd.f32 %v2627, %v1032
      %2660 = vrot.lane.b32.xlu0 %v2628, 4
      %v2661 = vpop.permute.xlu0 %2660
      %2662 = vrot.lane.b32.xlu0 %v2629, 4
      %v2663 = vpop.permute.xlu0 %2662
      %2664 = vrot.lane.b32.xlu0 %v2630, 4
      %v2665 = vpop.permute.xlu0 %2664
      %2666 = vrot.lane.b32.xlu0 %v2631, 4
      %v2667 = vpop.permute.xlu0 %2666
      %2668 = vrot.lane.b32.xlu0 %v2632, 4
      %v2669 = vpop.permute.xlu0 %2668
      %2670 = vrot.lane.b32.xlu0 %v2633, 4
      %v2671 = vpop.permute.xlu0 %2670
      %2672 = vrot.lane.b32.xlu0 %v2634, 4
      %v2673 = vpop.permute.xlu0 %2672
      %2674 = vrot.lane.b32.xlu0 %v2635, 4
      %v2675 = vpop.permute.xlu0 %2674
      %2676 = vrot.lane.b32.xlu0 %v2636, 4
      %v2677 = vpop.permute.xlu0 %2676
      %2678 = vrot.lane.b32.xlu0 %v2637, 4
      %v2679 = vpop.permute.xlu0 %2678
      %2680 = vrot.lane.b32.xlu0 %v2638, 4
      %v2681 = vpop.permute.xlu0 %2680
      %2682 = vrot.lane.b32.xlu0 %v2639, 4
      %v2683 = vpop.permute.xlu0 %2682
      %2684 = vrot.lane.b32.xlu0 %v2640, 4
      %v2685 = vpop.permute.xlu0 %2684
      %2686 = vrot.lane.b32.xlu0 %v2641, 4
      %v2687 = vpop.permute.xlu0 %2686
      %2688 = vrot.lane.b32.xlu0 %v2642, 4
      %v2689 = vpop.permute.xlu0 %2688
      %2690 = vrot.lane.b32.xlu0 %v2643, 4
      %v2691 = vpop.permute.xlu0 %2690
      %v2708 = vsel %vm421, %v2172, %v2661
      %v2709 = vsel %vm421, %v2173, %v2663
      %v2710 = vsel %vm421, %v2174, %v2665
      %v2711 = vsel %vm421, %v2175, %v2667
      %v2712 = vsel %vm421, %v2176, %v2669
      %v2713 = vsel %vm421, %v2177, %v2671
      %v2714 = vsel %vm421, %v2178, %v2673
      %v2715 = vsel %vm421, %v2179, %v2675
      %v2716 = vsel %vm421, %v2180, %v2677
      %v2717 = vsel %vm421, %v2181, %v2679
      %v2718 = vsel %vm421, %v2182, %v2681
      %v2719 = vsel %vm421, %v2183, %v2683
      %v2720 = vsel %vm421, %v2184, %v2685
      %v2721 = vsel %vm421, %v2185, %v2687
      %v2722 = vsel %vm421, %v2186, %v2689
      %v2723 = vsel %vm421, %v2187, %v2691
      %s2724 = scalar_lea.vmem %s395, 16
      %2725 = vst.msk [vmem:[%s2724] sm:$0xff] %vm1586, %v2708
      %2726 = vst.msk [vmem:[%s2724 + $0x8] sm:$0xff] %vm1586, %v2709
      %2727 = vst.msk [vmem:[%s2724 + $0x20] sm:$0xff] %vm1586, %v2710
      %2728 = vst.msk [vmem:[%s2724 + $0x28] sm:$0xff] %vm1586, %v2711
      %2729 = vst.msk [vmem:[%s2724 + $0x40] sm:$0xff] %vm1586, %v2712
      %2730 = vst.msk [vmem:[%s2724 + $0x48] sm:$0xff] %vm1586, %v2713
      %2731 = vst.msk [vmem:[%s2724 + $0x60] sm:$0xff] %vm1586, %v2714
      %2732 = vst.msk [vmem:[%s2724 + $0x68] sm:$0xff] %vm1586, %v2715
      %2733 = vst.msk [vmem:[%s2724 + $0x80] sm:$0xff] %vm1586, %v2716
      %2734 = vst.msk [vmem:[%s2724 + $0x88] sm:$0xff] %vm1586, %v2717
      %2735 = vst.msk [vmem:[%s2724 + $0xa0] sm:$0xff] %vm1586, %v2718
      %2736 = vst.msk [vmem:[%s2724 + $0xa8] sm:$0xff] %vm1586, %v2719
      %2737 = vst.msk [vmem:[%s2724 + $0xc0] sm:$0xff] %vm1586, %v2720
      %2738 = vst.msk [vmem:[%s2724 + $0xc8] sm:$0xff] %vm1586, %v2721
      %2739 = vst.msk [vmem:[%s2724 + $0xe0] sm:$0xff] %vm1586, %v2722
      %2740 = vst.msk [vmem:[%s2724 + $0xe8] sm:$0xff] %vm1586, %v2723
      %s2741 = smul.u32 8, %s21
      %p2742 = scmp.lt.s32.totalorder %s20, 1
      %s2743 = scalar_select %p2742, %s20, 1
      %p2744 = scmp.lt.s32.totalorder %s2741, 15
      %s2745 = scalar_select %p2744, %s2741, 15
      %s2746 = smul.addr %s2745, 4
      %s2747 = smul.addr %s2743, 64
      %s2748 = sadd.s32 %s2746, %s2747
      %s2749 = smul.addr %s2748, 8
      %s2750 = scalar_lea.vmem %s5, %s2749
      // Predicated region
      $region41: #{tpu_custom_call.1} parent=39 // pred_check
        %p2751 = pneg %p184
      $region42: #{tpu_custom_call.1} parent=39 // pred_check_branch
        %2753 = sbr.rel (%p2751) target = $region44
      $region43: #{tpu_custom_call.1} parent=39 // pred_region
        %s2754 = smul.u32 8, %s21
      $region44: #{tpu_custom_call.1} parent=39 // pred_fallthru
        _
    $region40: #{tpu_custom_call.1} parent=5 // pred_fallthru
      _
    %p2755 = scmp.le.s32.totalorder 2, %s11
    // Predicated region
    $region45: #{tpu_custom_call.1} parent=5 // pred_check
      %p2756 = pneg %p2755
    $region46: #{tpu_custom_call.1} parent=5 // pred_check_branch
      %2758 = sbr.rel (%p2756) target = $region48
    $region47: #{tpu_custom_call.1} parent=5 // pred_region
      %s2759 = ssub.s32 %s11, 2
      // Predicated region
      $region49: #{tpu_custom_call.1} parent=47 // pred_check
        %p2760 = pneg %p190
      $region50: #{tpu_custom_call.1} parent=47 // pred_check_branch
        %2762 = sbr.rel (%p2760) target = $region52
      $region51: #{tpu_custom_call.1} parent=47 // pred_region
        %s2763 = smul.u32 8, %s23
        %p2764 = scmp.lt.s32.totalorder %s22, 1
        %s2765 = scalar_select %p2764, %s22, 1
        %p2766 = scmp.lt.s32.totalorder %s2763, 15
        %s2767 = scalar_select %p2766, %s2763, 15
        %s2768 = smul.addr %s2767, 4
        %s2769 = smul.addr %s2765, 64
        %s2770 = sadd.s32 %s2768, %s2769
        %s2771 = smul.addr %s2770, 8
        %s2772 = scalar_lea.vmem %s5, %s2771
      $region52: #{tpu_custom_call.1} parent=47 // pred_fallthru
        _
    $region48: #{tpu_custom_call.1} parent=5 // pred_fallthru
      _
  $region6: #{tpu_custom_call.1} parent=0 // loop_footer
    %s15 = sadd.s32 1, %s11
  $region7: #{tpu_custom_call.1} parent=0 // loop_footer_branch
    %10 = sbr.rel target = $region3
  $region8: #{tpu_custom_call.1} parent=0 // loop_exit
    _

</llo_original>
